<compile_context>
chip_gen: v7x
topology: tpu7x:2x2x1
jax: 0.10.0
libtpu: 0.0.40
codegen_flags: <defaults>
</compile_context>

<pallas_src>
import jax
import jax.numpy as jnp
import numpy as np
from jax import lax
from jax.experimental import pallas as pl
from jax.experimental.pallas import tpu as pltpu


def _round_up(x, m):
    return ((x + m - 1) // m) * m


def make_lstm_fc_kernel(num_layers: int, seq_len: int, hidden: int, block_b: int):
    """Multi-layer LSTM (layer-0 gates precomputed) + final FC on one batch tile.

    Ref order:
      gates0 (T, tB, 4H)  f32   -- x @ W_ih0 + b0, gate order (i, f, o, g)
      w_hh0  (H, 4H)      bf16
      [w_ih_l (H, 4H) bf16, w_hh_l (H, 4H) bf16, b_l (1, 4H) f32]  for layers 1..L-1
      w_fc   (H, O) bf16, b_fc (1, O) f32
      out    (tB, O) f32
      scratch (only if L > 1): gates_scr (T, tB, 4H) f32, seq_scr (T, tB, H) bf16
    """
    T, H, tB = seq_len, hidden, block_b

    def kernel(*refs):
        it = iter(refs)
        gates0_ref = next(it)
        w_hh0_ref = next(it)
        deeper = [(next(it), next(it), next(it)) for _ in range(num_layers - 1)]
        w_fc_ref = next(it)
        b_fc_ref = next(it)
        out_ref = next(it)
        if num_layers > 1:
            gates_scr = next(it)
            seq_scr = next(it)
        else:
            gates_scr = seq_scr = None

        def run_layer(gate_src_ref, w_hh_ref, write_seq):
            def step(t, carry):
                h, c = carry
                # Only the recurrent matmul sits on the serial path; W_hh is read at the
                # dot site (bf16 operand, f32 accumulation).
                g = gate_src_ref[t] + jnp.dot(
                    h.astype(w_hh_ref.dtype), w_hh_ref[...],
                    preferred_element_type=jnp.float32)
                # Gate order (i, f, o, g): one sigmoid over 3H lanes, one tanh over H.
                sig = jax.nn.sigmoid(g[:, :3 * H])
                g_g = jnp.tanh(g[:, 3 * H:])
                c = sig[:, H:2 * H] * c + sig[:, :H] * g_g
                h = sig[:, 2 * H:3 * H] * jnp.tanh(c)
                if write_seq:
                    seq_scr[t] = h.astype(seq_scr.dtype)   # feed the next layer
                return h, c

            h0 = jnp.zeros((tB, H), jnp.float32)
            c0 = jnp.zeros((tB, H), jnp.float32)
            h_last, _ = lax.fori_loop(0, T, step, (h0, c0), unroll=min(T, 8))
            return h_last

        # Layer 0: gate pre-activations come straight from the pipelined input stream.
        h_last = run_layer(gates0_ref, w_hh0_ref, write_seq=(num_layers > 1))

        # Deeper layers: hoist the (non-sequential) input projection as one big matmul,
        # then run the recurrence off the gates scratch.
        for li, (w_ih_ref, w_hh_ref, b_ref) in enumerate(deeper):
            seq = seq_scr[...]                              # (T, tB, H) bf16
            proj = jnp.dot(seq.reshape(T * tB, H), w_ih_ref[...],
                           preferred_element_type=jnp.float32) + b_ref[...]
            gates_scr[...] = proj.reshape(T, tB, 4 * H)
            is_last = li == num_layers - 2
            h_last = run_layer(gates_scr, w_hh_ref, write_seq=not is_last)

        # FC on the last timestep of the last layer.
        out_ref[...] = (jnp.dot(h_last.astype(w_fc_ref.dtype), w_fc_ref[...],
                                preferred_element_type=jnp.float32)
                        + b_fc_ref[...]).astype(out_ref.dtype)

    return kernel


def _reorder_gates(w):
    """Reorder the 4H gate axis from PyTorch (i, f, g, o) to kernel (i, f, o, g)."""
    i, f, g, o = jnp.split(w, 4, axis=-1)
    return jnp.concatenate([i, f, o, g], axis=-1)


def asset_relationship_forward(x, layer_params, w_fc, b_fc, *, block_b=None,
                               weight_dtype=jnp.bfloat16):
    """x: (B, T, input_size) float32, batch_first like PyTorch nn.LSTM."""
    B, T, I = x.shape
    H = layer_params[0][1].shape[0]
    O = w_fc.shape[1]
    num_layers = len(layer_params)

    # ---- batch tile: as fat as reasonable (multiple of 8 sublanes), split once for v7x ----
    if block_b is None:
        bp8 = _round_up(B, 8)
        block_b = min(128, bp8)
        if bp8 // block_b == 1 and block_b >= 64:
            block_b //= 2          # keep both v7x TensorCores busy for mid-size batches
    Bp = _round_up(max(B, block_b), block_b)

    # ---- layer-0 input projection hoisted to XLA (f32, high precision), time-major ----
    w_ih0, w_hh0, b0 = layer_params[0]
    gates0 = jnp.einsum("bti,ig->btg", x, _reorder_gates(w_ih0),
                        precision=lax.Precision.HIGHEST) + _reorder_gates(b0)
    gates0 = jnp.transpose(gates0, (1, 0, 2))                     # (T, B, 4H)
    gates0 = jnp.pad(gates0, ((0, 0), (0, Bp - B), (0, 0))).astype(jnp.float32)

    def cast_w(w):
        return _reorder_gates(w).astype(weight_dtype)

    inputs = [gates0, cast_w(w_hh0)]
    in_specs = [
        pl.BlockSpec((T, block_b, 4 * H), lambda b: (0, b, 0)),
        pl.BlockSpec((H, 4 * H), lambda b: (0, 0)),
    ]
    for (w_ih, w_hh, b) in layer_params[1:]:
        inputs += [cast_w(w_ih), cast_w(w_hh), _reorder_gates(b).astype(jnp.float32)]
        in_specs += [
            pl.BlockSpec((H, 4 * H), lambda b: (0, 0)),
            pl.BlockSpec((H, 4 * H), lambda b: (0, 0)),
            pl.BlockSpec((1, 4 * H), lambda b: (0, 0)),
        ]
    inputs += [w_fc.astype(weight_dtype), b_fc.astype(jnp.float32)]
    in_specs += [
        pl.BlockSpec((H, O), lambda b: (0, 0)),
        pl.BlockSpec((1, O), lambda b: (0, 0)),
    ]

    scratch_shapes = []
    if num_layers > 1:
        scratch_shapes = [
            pltpu.VMEM((T, block_b, 4 * H), jnp.float32),   # hoisted gate pre-activations
            pltpu.VMEM((T, block_b, H), weight_dtype),      # inter-layer hidden sequence
        ]

    kernel = make_lstm_fc_kernel(num_layers, T, H, block_b)

    out = pl.pallas_call(
        kernel,
        out_shape=jax.ShapeDtypeStruct((Bp, O), jnp.float32),
        grid_spec=pltpu.PrefetchScalarGridSpec(
            num_scalar_prefetch=0,
            grid=(Bp // block_b,),
            in_specs=in_specs,
            out_specs=pl.BlockSpec((block_b, O), lambda b: (b, 0)),
            scratch_shapes=scratch_shapes,
        ),
        compiler_params=pltpu.CompilerParams(
            dimension_semantics=("parallel",),
        ),
    )(*inputs)
    return out[:B]


def init_params(key, input_size, hidden_size, num_layers, output_size):
    """Deterministic PyTorch-style uniform(-1/sqrt(H), 1/sqrt(H)) init.

    Weights stored pre-transposed for right-multiplication:
      w_ih: (in_dim, 4H), w_hh: (H, 4H), b: (1, 4H) = b_ih + b_hh.
    Gate order along the 4H axis is (i, f, g, o), matching nn.LSTM.
    """
    k = 1.0 / np.sqrt(hidden_size)
    layers = []
    for layer in range(num_layers):
        in_dim = input_size if layer == 0 else hidden_size
        key, k1, k2, k3, k4 = jax.random.split(key, 5)
        w_ih = jax.random.uniform(k1, (in_dim, 4 * hidden_size), jnp.float32, -k, k)
        w_hh = jax.random.uniform(k2, (hidden_size, 4 * hidden_size), jnp.float32, -k, k)
        b_ih = jax.random.uniform(k3, (1, 4 * hidden_size), jnp.float32, -k, k)
        b_hh = jax.random.uniform(k4, (1, 4 * hidden_size), jnp.float32, -k, k)
        layers.append((w_ih, w_hh, b_ih + b_hh))
    key, k5, k6 = jax.random.split(key, 3)
    w_fc = jax.random.uniform(k5, (hidden_size, output_size), jnp.float32, -k, k)
    b_fc = jax.random.uniform(k6, (1, output_size), jnp.float32, -k, k)
    return layers, w_fc, b_fc


def reference_forward(x, layer_params, w_fc, b_fc):
    """Pure-JAX f32 reference (mirrors nn.LSTM + nn.Linear) for verification."""
    hp = lax.Precision.HIGHEST
    seq = x
    B = x.shape[0]
    T = x.shape[1]
    for (w_ih, w_hh, b) in layer_params:
        H = w_hh.shape[0]
        h = jnp.zeros((B, H), jnp.float32)
        c = jnp.zeros((B, H), jnp.float32)
        outs = []
        for t in range(T):
            gates = (jnp.dot(seq[:, t, :], w_ih, precision=hp)
                     + jnp.dot(h, w_hh, precision=hp) + b)
            i = jax.nn.sigmoid(gates[:, 0 * H:1 * H])
            f = jax.nn.sigmoid(gates[:, 1 * H:2 * H])
            g = jnp.tanh(gates[:, 2 * H:3 * H])
            o = jax.nn.sigmoid(gates[:, 3 * H:4 * H])
            c = f * c + i * g
            h = o * jnp.tanh(c)
            outs.append(h)
        seq = jnp.stack(outs, axis=1)
    return jnp.dot(seq[:, -1, :], w_fc, precision=hp) + b_fc


if __name__ == "__main__":
    # Small, module-consistent shapes. batch=12 exercises batch padding (-> 16).
    batch, seq_len = 12, 8
    input_size, hidden_size, num_layers, output_size = 8, 32, 2, 4

    key = jax.random.PRNGKey(0)
    key, kx = jax.random.split(key)
    x = jax.random.normal(kx, (batch, seq_len, input_size), jnp.float32)

    layer_params, w_fc, b_fc = init_params(
        key, input_size, hidden_size, num_layers, output_size)

    y = asset_relationship_forward(x, layer_params, w_fc, b_fc)
    y = jax.block_until_ready(y)

    y_ref = reference_forward(x, layer_params, w_fc, b_fc)
    # bf16 weight storage (f32 accumulation) -> loosened parity tolerance per review.
    np.testing.assert_allclose(np.asarray(y), np.asarray(y_ref), rtol=2e-2, atol=2e-2)

    print("KERNEL_OK")
</pallas_src>

<mosaic_0001>
module attributes {stable_mosaic.version = 11 : i64} {
  func.func @kernel(%arg0: i32, %arg1: memref<8x16x128xf32, #tpu.memory_space<vmem>>, %arg2: memref<32x128xbf16, #tpu.memory_space<vmem>>, %arg3: memref<32x128xbf16, #tpu.memory_space<vmem>>, %arg4: memref<32x128xbf16, #tpu.memory_space<vmem>>, %arg5: memref<1x128xf32, #tpu.memory_space<vmem>>, %arg6: memref<32x4xbf16, #tpu.memory_space<vmem>>, %arg7: memref<1x4xf32, #tpu.memory_space<vmem>>, %arg8: memref<16x4xf32, #tpu.memory_space<vmem>>, %arg9: memref<8x16x128xf32, #tpu.memory_space<vmem>>, %arg10: memref<8x16x32xbf16, #tpu.memory_space<vmem>>) attributes {dimension_semantics = [#tpu.dimension_semantics<parallel>], iteration_bounds = array<i64: 1>, scalar_prefetch = 0 : i64, scratch_operands = 2 : i64, tpu.core_type = #tpu.core_type<tc>, window_params = [{transform_indices = @transform_0, window_bounds = array<i64: 8, 16, 128>}, {pipeline_mode = #tpu.pipeline_mode<synchronous>, transform_indices = @transform_1, window_bounds = array<i64: 32, 128>}, {pipeline_mode = #tpu.pipeline_mode<synchronous>, transform_indices = @transform_2, window_bounds = array<i64: 32, 128>}, {pipeline_mode = #tpu.pipeline_mode<synchronous>, transform_indices = @transform_3, window_bounds = array<i64: 32, 128>}, {pipeline_mode = #tpu.pipeline_mode<synchronous>, transform_indices = @transform_4, window_bounds = array<i64: 1, 128>}, {pipeline_mode = #tpu.pipeline_mode<synchronous>, transform_indices = @transform_5, window_bounds = array<i64: 32, 4>}, {pipeline_mode = #tpu.pipeline_mode<synchronous>, transform_indices = @transform_6, window_bounds = array<i64: 1, 4>}, {transform_indices = @transform_7, window_bounds = array<i64: 16, 4>}]} {
    %cst = arith.constant 0.000000e+00 : f32
    %0 = vector.broadcast %cst : f32 to vector<16x32xf32>
    %cst_0 = arith.constant 0.000000e+00 : f32
    %1 = vector.broadcast %cst_0 : f32 to vector<16x32xf32>
    %c0_i32 = arith.constant 0 : i32
    %2 = arith.index_cast %c0_i32 : i32 to index
    %c0 = arith.constant 0 : index
    %c0_1 = arith.constant 0 : index
    %3 = vector.load %arg1[%2, %c0, %c0_1] : memref<8x16x128xf32, #tpu.memory_space<vmem>>, vector<1x16x128xf32>
    %4 = vector.shape_cast %3 : vector<1x16x128xf32> to vector<16x128xf32>
    %5 = arith.truncf %0 : vector<16x32xf32> to vector<16x32xbf16>
    %c0_2 = arith.constant 0 : index
    %c0_3 = arith.constant 0 : index
    %6 = vector.load %arg2[%c0_2, %c0_3] : memref<32x128xbf16, #tpu.memory_space<vmem>>, vector<32x128xbf16>
    %cst_4 = arith.constant dense<0.000000e+00> : vector<16x128xf32>
    %7 = tpu.matmul %5, %6, %cst_4 {dimension_numbers = #tpu.dot_dimension_numbers<[1], [0], [0], [1], [0, 0, 1, 1], [], []>} : vector<16x32xbf16>, vector<32x128xbf16>, vector<16x128xf32> -> vector<16x128xf32>
    %8 = arith.addf %4, %7 : vector<16x128xf32>
    %9 = vector.extract_strided_slice %8 {offsets = [0, 0], sizes = [16, 96], strides = [1, 1]} : vector<16x128xf32> to vector<16x96xf32>
    %10 = arith.negf %9 : vector<16x96xf32>
    %11 = math.exp %10 : vector<16x96xf32>
    %cst_5 = arith.constant 1.000000e+00 : f32
    %12 = vector.broadcast %cst_5 : f32 to vector<16x96xf32>
    %13 = arith.addf %12, %11 : vector<16x96xf32>
    %14 = arith.divf %12, %13 : vector<16x96xf32>
    %15 = vector.extract_strided_slice %8 {offsets = [0, 96], sizes = [16, 32], strides = [1, 1]} : vector<16x128xf32> to vector<16x32xf32>
    %16 = math.tanh %15 : vector<16x32xf32>
    %17 = vector.extract_strided_slice %14 {offsets = [0, 32], sizes = [16, 32], strides = [1, 1]} : vector<16x96xf32> to vector<16x32xf32>
    %18 = arith.mulf %17, %1 : vector<16x32xf32>
    %19 = vector.extract_strided_slice %14 {offsets = [0, 0], sizes = [16, 32], strides = [1, 1]} : vector<16x96xf32> to vector<16x32xf32>
    %20 = arith.mulf %19, %16 : vector<16x32xf32>
    %21 = arith.addf %18, %20 : vector<16x32xf32>
    %22 = vector.extract_strided_slice %14 {offsets = [0, 64], sizes = [16, 32], strides = [1, 1]} : vector<16x96xf32> to vector<16x32xf32>
    %23 = math.tanh %21 : vector<16x32xf32>
    %24 = arith.mulf %22, %23 : vector<16x32xf32>
    %25 = arith.truncf %24 : vector<16x32xf32> to vector<16x32xbf16>
    %26 = arith.index_cast %c0_i32 : i32 to index
    %c0_6 = arith.constant 0 : index
    %c0_7 = arith.constant 0 : index
    %27 = vector.load %arg10[%26, %c0_6, %c0_7] : memref<8x16x32xbf16, #tpu.memory_space<vmem>>, vector<1x16x32xbf16>
    %28 = vector.shape_cast %27 : vector<1x16x32xbf16> to vector<16x32xbf16>
    %29 = vector.shape_cast %25 : vector<16x32xbf16> to vector<1x16x32xbf16>
    tpu.vector_store %arg10[%26, %c0_6, %c0_7], %29 {strides = array<i32>} : memref<8x16x32xbf16, #tpu.memory_space<vmem>>, vector<1x16x32xbf16>,
    %c1_i32 = arith.constant 1 : i32
    %30 = arith.index_cast %c1_i32 : i32 to index
    %c0_8 = arith.constant 0 : index
    %c0_9 = arith.constant 0 : index
    %31 = vector.load %arg1[%30, %c0_8, %c0_9] : memref<8x16x128xf32, #tpu.memory_space<vmem>>, vector<1x16x128xf32>
    %32 = vector.shape_cast %31 : vector<1x16x128xf32> to vector<16x128xf32>
    %33 = arith.truncf %24 : vector<16x32xf32> to vector<16x32xbf16>
    %c0_10 = arith.constant 0 : index
    %c0_11 = arith.constant 0 : index
    %34 = vector.load %arg2[%c0_10, %c0_11] : memref<32x128xbf16, #tpu.memory_space<vmem>>, vector<32x128xbf16>
    %cst_12 = arith.constant dense<0.000000e+00> : vector<16x128xf32>
    %35 = tpu.matmul %33, %34, %cst_12 {dimension_numbers = #tpu.dot_dimension_numbers<[1], [0], [0], [1], [0, 0, 1, 1], [], []>} : vector<16x32xbf16>, vector<32x128xbf16>, vector<16x128xf32> -> vector<16x128xf32>
    %36 = arith.addf %32, %35 : vector<16x128xf32>
    %37 = vector.extract_strided_slice %36 {offsets = [0, 0], sizes = [16, 96], strides = [1, 1]} : vector<16x128xf32> to vector<16x96xf32>
    %38 = arith.negf %37 : vector<16x96xf32>
    %39 = math.exp %38 : vector<16x96xf32>
    %cst_13 = arith.constant 1.000000e+00 : f32
    %40 = vector.broadcast %cst_13 : f32 to vector<16x96xf32>
    %41 = arith.addf %40, %39 : vector<16x96xf32>
    %42 = arith.divf %40, %41 : vector<16x96xf32>
    %43 = vector.extract_strided_slice %36 {offsets = [0, 96], sizes = [16, 32], strides = [1, 1]} : vector<16x128xf32> to vector<16x32xf32>
    %44 = math.tanh %43 : vector<16x32xf32>
    %45 = vector.extract_strided_slice %42 {offsets = [0, 32], sizes = [16, 32], strides = [1, 1]} : vector<16x96xf32> to vector<16x32xf32>
    %46 = arith.mulf %45, %21 : vector<16x32xf32>
    %47 = vector.extract_strided_slice %42 {offsets = [0, 0], sizes = [16, 32], strides = [1, 1]} : vector<16x96xf32> to vector<16x32xf32>
    %48 = arith.mulf %47, %44 : vector<16x32xf32>
    %49 = arith.addf %46, %48 : vector<16x32xf32>
    %50 = vector.extract_strided_slice %42 {offsets = [0, 64], sizes = [16, 32], strides = [1, 1]} : vector<16x96xf32> to vector<16x32xf32>
    %51 = math.tanh %49 : vector<16x32xf32>
    %52 = arith.mulf %50, %51 : vector<16x32xf32>
    %53 = arith.truncf %52 : vector<16x32xf32> to vector<16x32xbf16>
    %54 = arith.index_cast %c1_i32 : i32 to index
    %c0_14 = arith.constant 0 : index
    %c0_15 = arith.constant 0 : index
    %55 = vector.load %arg10[%54, %c0_14, %c0_15] : memref<8x16x32xbf16, #tpu.memory_space<vmem>>, vector<1x16x32xbf16>
    %56 = vector.shape_cast %55 : vector<1x16x32xbf16> to vector<16x32xbf16>
    %57 = vector.shape_cast %53 : vector<16x32xbf16> to vector<1x16x32xbf16>
    tpu.vector_store %arg10[%54, %c0_14, %c0_15], %57 {strides = array<i32>} : memref<8x16x32xbf16, #tpu.memory_space<vmem>>, vector<1x16x32xbf16>,
    %c2_i32 = arith.constant 2 : i32
    %58 = arith.index_cast %c2_i32 : i32 to index
    %c0_16 = arith.constant 0 : index
    %c0_17 = arith.constant 0 : index
    %59 = vector.load %arg1[%58, %c0_16, %c0_17] : memref<8x16x128xf32, #tpu.memory_space<vmem>>, vector<1x16x128xf32>
    %60 = vector.shape_cast %59 : vector<1x16x128xf32> to vector<16x128xf32>
    %61 = arith.truncf %52 : vector<16x32xf32> to vector<16x32xbf16>
    %c0_18 = arith.constant 0 : index
    %c0_19 = arith.constant 0 : index
    %62 = vector.load %arg2[%c0_18, %c0_19] : memref<32x128xbf16, #tpu.memory_space<vmem>>, vector<32x128xbf16>
    %cst_20 = arith.constant dense<0.000000e+00> : vector<16x128xf32>
    %63 = tpu.matmul %61, %62, %cst_20 {dimension_numbers = #tpu.dot_dimension_numbers<[1], [0], [0], [1], [0, 0, 1, 1], [], []>} : vector<16x32xbf16>, vector<32x128xbf16>, vector<16x128xf32> -> vector<16x128xf32>
    %64 = arith.addf %60, %63 : vector<16x128xf32>
    %65 = vector.extract_strided_slice %64 {offsets = [0, 0], sizes = [16, 96], strides = [1, 1]} : vector<16x128xf32> to vector<16x96xf32>
    %66 = arith.negf %65 : vector<16x96xf32>
    %67 = math.exp %66 : vector<16x96xf32>
    %cst_21 = arith.constant 1.000000e+00 : f32
    %68 = vector.broadcast %cst_21 : f32 to vector<16x96xf32>
    %69 = arith.addf %68, %67 : vector<16x96xf32>
    %70 = arith.divf %68, %69 : vector<16x96xf32>
    %71 = vector.extract_strided_slice %64 {offsets = [0, 96], sizes = [16, 32], strides = [1, 1]} : vector<16x128xf32> to vector<16x32xf32>
    %72 = math.tanh %71 : vector<16x32xf32>
    %73 = vector.extract_strided_slice %70 {offsets = [0, 32], sizes = [16, 32], strides = [1, 1]} : vector<16x96xf32> to vector<16x32xf32>
    %74 = arith.mulf %73, %49 : vector<16x32xf32>
    %75 = vector.extract_strided_slice %70 {offsets = [0, 0], sizes = [16, 32], strides = [1, 1]} : vector<16x96xf32> to vector<16x32xf32>
    %76 = arith.mulf %75, %72 : vector<16x32xf32>
    %77 = arith.addf %74, %76 : vector<16x32xf32>
    %78 = vector.extract_strided_slice %70 {offsets = [0, 64], sizes = [16, 32], strides = [1, 1]} : vector<16x96xf32> to vector<16x32xf32>
    %79 = math.tanh %77 : vector<16x32xf32>
    %80 = arith.mulf %78, %79 : vector<16x32xf32>
    %81 = arith.truncf %80 : vector<16x32xf32> to vector<16x32xbf16>
    %82 = arith.index_cast %c2_i32 : i32 to index
    %c0_22 = arith.constant 0 : index
    %c0_23 = arith.constant 0 : index
    %83 = vector.load %arg10[%82, %c0_22, %c0_23] : memref<8x16x32xbf16, #tpu.memory_space<vmem>>, vector<1x16x32xbf16>
    %84 = vector.shape_cast %83 : vector<1x16x32xbf16> to vector<16x32xbf16>
    %85 = vector.shape_cast %81 : vector<16x32xbf16> to vector<1x16x32xbf16>
    tpu.vector_store %arg10[%82, %c0_22, %c0_23], %85 {strides = array<i32>} : memref<8x16x32xbf16, #tpu.memory_space<vmem>>, vector<1x16x32xbf16>,
    %c3_i32 = arith.constant 3 : i32
    %86 = arith.index_cast %c3_i32 : i32 to index
    %c0_24 = arith.constant 0 : index
    %c0_25 = arith.constant 0 : index
    %87 = vector.load %arg1[%86, %c0_24, %c0_25] : memref<8x16x128xf32, #tpu.memory_space<vmem>>, vector<1x16x128xf32>
    %88 = vector.shape_cast %87 : vector<1x16x128xf32> to vector<16x128xf32>
    %89 = arith.truncf %80 : vector<16x32xf32> to vector<16x32xbf16>
    %c0_26 = arith.constant 0 : index
    %c0_27 = arith.constant 0 : index
    %90 = vector.load %arg2[%c0_26, %c0_27] : memref<32x128xbf16, #tpu.memory_space<vmem>>, vector<32x128xbf16>
    %cst_28 = arith.constant dense<0.000000e+00> : vector<16x128xf32>
    %91 = tpu.matmul %89, %90, %cst_28 {dimension_numbers = #tpu.dot_dimension_numbers<[1], [0], [0], [1], [0, 0, 1, 1], [], []>} : vector<16x32xbf16>, vector<32x128xbf16>, vector<16x128xf32> -> vector<16x128xf32>
    %92 = arith.addf %88, %91 : vector<16x128xf32>
    %93 = vector.extract_strided_slice %92 {offsets = [0, 0], sizes = [16, 96], strides = [1, 1]} : vector<16x128xf32> to vector<16x96xf32>
    %94 = arith.negf %93 : vector<16x96xf32>
    %95 = math.exp %94 : vector<16x96xf32>
    %cst_29 = arith.constant 1.000000e+00 : f32
    %96 = vector.broadcast %cst_29 : f32 to vector<16x96xf32>
    %97 = arith.addf %96, %95 : vector<16x96xf32>
    %98 = arith.divf %96, %97 : vector<16x96xf32>
    %99 = vector.extract_strided_slice %92 {offsets = [0, 96], sizes = [16, 32], strides = [1, 1]} : vector<16x128xf32> to vector<16x32xf32>
    %100 = math.tanh %99 : vector<16x32xf32>
    %101 = vector.extract_strided_slice %98 {offsets = [0, 32], sizes = [16, 32], strides = [1, 1]} : vector<16x96xf32> to vector<16x32xf32>
    %102 = arith.mulf %101, %77 : vector<16x32xf32>
    %103 = vector.extract_strided_slice %98 {offsets = [0, 0], sizes = [16, 32], strides = [1, 1]} : vector<16x96xf32> to vector<16x32xf32>
    %104 = arith.mulf %103, %100 : vector<16x32xf32>
    %105 = arith.addf %102, %104 : vector<16x32xf32>
    %106 = vector.extract_strided_slice %98 {offsets = [0, 64], sizes = [16, 32], strides = [1, 1]} : vector<16x96xf32> to vector<16x32xf32>
    %107 = math.tanh %105 : vector<16x32xf32>
    %108 = arith.mulf %106, %107 : vector<16x32xf32>
    %109 = arith.truncf %108 : vector<16x32xf32> to vector<16x32xbf16>
    %110 = arith.index_cast %c3_i32 : i32 to index
    %c0_30 = arith.constant 0 : index
    %c0_31 = arith.constant 0 : index
    %111 = vector.load %arg10[%110, %c0_30, %c0_31] : memref<8x16x32xbf16, #tpu.memory_space<vmem>>, vector<1x16x32xbf16>
    %112 = vector.shape_cast %111 : vector<1x16x32xbf16> to vector<16x32xbf16>
    %113 = vector.shape_cast %109 : vector<16x32xbf16> to vector<1x16x32xbf16>
    tpu.vector_store %arg10[%110, %c0_30, %c0_31], %113 {strides = array<i32>} : memref<8x16x32xbf16, #tpu.memory_space<vmem>>, vector<1x16x32xbf16>,
    %c4_i32 = arith.constant 4 : i32
    %114 = arith.index_cast %c4_i32 : i32 to index
    %c0_32 = arith.constant 0 : index
    %c0_33 = arith.constant 0 : index
    %115 = vector.load %arg1[%114, %c0_32, %c0_33] : memref<8x16x128xf32, #tpu.memory_space<vmem>>, vector<1x16x128xf32>
    %116 = vector.shape_cast %115 : vector<1x16x128xf32> to vector<16x128xf32>
    %117 = arith.truncf %108 : vector<16x32xf32> to vector<16x32xbf16>
    %c0_34 = arith.constant 0 : index
    %c0_35 = arith.constant 0 : index
    %118 = vector.load %arg2[%c0_34, %c0_35] : memref<32x128xbf16, #tpu.memory_space<vmem>>, vector<32x128xbf16>
    %cst_36 = arith.constant dense<0.000000e+00> : vector<16x128xf32>
    %119 = tpu.matmul %117, %118, %cst_36 {dimension_numbers = #tpu.dot_dimension_numbers<[1], [0], [0], [1], [0, 0, 1, 1], [], []>} : vector<16x32xbf16>, vector<32x128xbf16>, vector<16x128xf32> -> vector<16x128xf32>
    %120 = arith.addf %116, %119 : vector<16x128xf32>
    %121 = vector.extract_strided_slice %120 {offsets = [0, 0], sizes = [16, 96], strides = [1, 1]} : vector<16x128xf32> to vector<16x96xf32>
    %122 = arith.negf %121 : vector<16x96xf32>
    %123 = math.exp %122 : vector<16x96xf32>
    %cst_37 = arith.constant 1.000000e+00 : f32
    %124 = vector.broadcast %cst_37 : f32 to vector<16x96xf32>
    %125 = arith.addf %124, %123 : vector<16x96xf32>
    %126 = arith.divf %124, %125 : vector<16x96xf32>
    %127 = vector.extract_strided_slice %120 {offsets = [0, 96], sizes = [16, 32], strides = [1, 1]} : vector<16x128xf32> to vector<16x32xf32>
    %128 = math.tanh %127 : vector<16x32xf32>
    %129 = vector.extract_strided_slice %126 {offsets = [0, 32], sizes = [16, 32], strides = [1, 1]} : vector<16x96xf32> to vector<16x32xf32>
    %130 = arith.mulf %129, %105 : vector<16x32xf32>
    %131 = vector.extract_strided_slice %126 {offsets = [0, 0], sizes = [16, 32], strides = [1, 1]} : vector<16x96xf32> to vector<16x32xf32>
    %132 = arith.mulf %131, %128 : vector<16x32xf32>
    %133 = arith.addf %130, %132 : vector<16x32xf32>
    %134 = vector.extract_strided_slice %126 {offsets = [0, 64], sizes = [16, 32], strides = [1, 1]} : vector<16x96xf32> to vector<16x32xf32>
    %135 = math.tanh %133 : vector<16x32xf32>
    %136 = arith.mulf %134, %135 : vector<16x32xf32>
    %137 = arith.truncf %136 : vector<16x32xf32> to vector<16x32xbf16>
    %138 = arith.index_cast %c4_i32 : i32 to index
    %c0_38 = arith.constant 0 : index
    %c0_39 = arith.constant 0 : index
    %139 = vector.load %arg10[%138, %c0_38, %c0_39] : memref<8x16x32xbf16, #tpu.memory_space<vmem>>, vector<1x16x32xbf16>
    %140 = vector.shape_cast %139 : vector<1x16x32xbf16> to vector<16x32xbf16>
    %141 = vector.shape_cast %137 : vector<16x32xbf16> to vector<1x16x32xbf16>
    tpu.vector_store %arg10[%138, %c0_38, %c0_39], %141 {strides = array<i32>} : memref<8x16x32xbf16, #tpu.memory_space<vmem>>, vector<1x16x32xbf16>,
    %c5_i32 = arith.constant 5 : i32
    %142 = arith.index_cast %c5_i32 : i32 to index
    %c0_40 = arith.constant 0 : index
    %c0_41 = arith.constant 0 : index
    %143 = vector.load %arg1[%142, %c0_40, %c0_41] : memref<8x16x128xf32, #tpu.memory_space<vmem>>, vector<1x16x128xf32>
    %144 = vector.shape_cast %143 : vector<1x16x128xf32> to vector<16x128xf32>
    %145 = arith.truncf %136 : vector<16x32xf32> to vector<16x32xbf16>
    %c0_42 = arith.constant 0 : index
    %c0_43 = arith.constant 0 : index
    %146 = vector.load %arg2[%c0_42, %c0_43] : memref<32x128xbf16, #tpu.memory_space<vmem>>, vector<32x128xbf16>
    %cst_44 = arith.constant dense<0.000000e+00> : vector<16x128xf32>
    %147 = tpu.matmul %145, %146, %cst_44 {dimension_numbers = #tpu.dot_dimension_numbers<[1], [0], [0], [1], [0, 0, 1, 1], [], []>} : vector<16x32xbf16>, vector<32x128xbf16>, vector<16x128xf32> -> vector<16x128xf32>
    %148 = arith.addf %144, %147 : vector<16x128xf32>
    %149 = vector.extract_strided_slice %148 {offsets = [0, 0], sizes = [16, 96], strides = [1, 1]} : vector<16x128xf32> to vector<16x96xf32>
    %150 = arith.negf %149 : vector<16x96xf32>
    %151 = math.exp %150 : vector<16x96xf32>
    %cst_45 = arith.constant 1.000000e+00 : f32
    %152 = vector.broadcast %cst_45 : f32 to vector<16x96xf32>
    %153 = arith.addf %152, %151 : vector<16x96xf32>
    %154 = arith.divf %152, %153 : vector<16x96xf32>
    %155 = vector.extract_strided_slice %148 {offsets = [0, 96], sizes = [16, 32], strides = [1, 1]} : vector<16x128xf32> to vector<16x32xf32>
    %156 = math.tanh %155 : vector<16x32xf32>
    %157 = vector.extract_strided_slice %154 {offsets = [0, 32], sizes = [16, 32], strides = [1, 1]} : vector<16x96xf32> to vector<16x32xf32>
    %158 = arith.mulf %157, %133 : vector<16x32xf32>
    %159 = vector.extract_strided_slice %154 {offsets = [0, 0], sizes = [16, 32], strides = [1, 1]} : vector<16x96xf32> to vector<16x32xf32>
    %160 = arith.mulf %159, %156 : vector<16x32xf32>
    %161 = arith.addf %158, %160 : vector<16x32xf32>
    %162 = vector.extract_strided_slice %154 {offsets = [0, 64], sizes = [16, 32], strides = [1, 1]} : vector<16x96xf32> to vector<16x32xf32>
    %163 = math.tanh %161 : vector<16x32xf32>
    %164 = arith.mulf %162, %163 : vector<16x32xf32>
    %165 = arith.truncf %164 : vector<16x32xf32> to vector<16x32xbf16>
    %166 = arith.index_cast %c5_i32 : i32 to index
    %c0_46 = arith.constant 0 : index
    %c0_47 = arith.constant 0 : index
    %167 = vector.load %arg10[%166, %c0_46, %c0_47] : memref<8x16x32xbf16, #tpu.memory_space<vmem>>, vector<1x16x32xbf16>
    %168 = vector.shape_cast %167 : vector<1x16x32xbf16> to vector<16x32xbf16>
    %169 = vector.shape_cast %165 : vector<16x32xbf16> to vector<1x16x32xbf16>
    tpu.vector_store %arg10[%166, %c0_46, %c0_47], %169 {strides = array<i32>} : memref<8x16x32xbf16, #tpu.memory_space<vmem>>, vector<1x16x32xbf16>,
    %c6_i32 = arith.constant 6 : i32
    %170 = arith.index_cast %c6_i32 : i32 to index
    %c0_48 = arith.constant 0 : index
    %c0_49 = arith.constant 0 : index
    %171 = vector.load %arg1[%170, %c0_48, %c0_49] : memref<8x16x128xf32, #tpu.memory_space<vmem>>, vector<1x16x128xf32>
    %172 = vector.shape_cast %171 : vector<1x16x128xf32> to vector<16x128xf32>
    %173 = arith.truncf %164 : vector<16x32xf32> to vector<16x32xbf16>
    %c0_50 = arith.constant 0 : index
    %c0_51 = arith.constant 0 : index
    %174 = vector.load %arg2[%c0_50, %c0_51] : memref<32x128xbf16, #tpu.memory_space<vmem>>, vector<32x128xbf16>
    %cst_52 = arith.constant dense<0.000000e+00> : vector<16x128xf32>
    %175 = tpu.matmul %173, %174, %cst_52 {dimension_numbers = #tpu.dot_dimension_numbers<[1], [0], [0], [1], [0, 0, 1, 1], [], []>} : vector<16x32xbf16>, vector<32x128xbf16>, vector<16x128xf32> -> vector<16x128xf32>
    %176 = arith.addf %172, %175 : vector<16x128xf32>
    %177 = vector.extract_strided_slice %176 {offsets = [0, 0], sizes = [16, 96], strides = [1, 1]} : vector<16x128xf32> to vector<16x96xf32>
    %178 = arith.negf %177 : vector<16x96xf32>
    %179 = math.exp %178 : vector<16x96xf32>
    %cst_53 = arith.constant 1.000000e+00 : f32
    %180 = vector.broadcast %cst_53 : f32 to vector<16x96xf32>
    %181 = arith.addf %180, %179 : vector<16x96xf32>
    %182 = arith.divf %180, %181 : vector<16x96xf32>
    %183 = vector.extract_strided_slice %176 {offsets = [0, 96], sizes = [16, 32], strides = [1, 1]} : vector<16x128xf32> to vector<16x32xf32>
    %184 = math.tanh %183 : vector<16x32xf32>
    %185 = vector.extract_strided_slice %182 {offsets = [0, 32], sizes = [16, 32], strides = [1, 1]} : vector<16x96xf32> to vector<16x32xf32>
    %186 = arith.mulf %185, %161 : vector<16x32xf32>
    %187 = vector.extract_strided_slice %182 {offsets = [0, 0], sizes = [16, 32], strides = [1, 1]} : vector<16x96xf32> to vector<16x32xf32>
    %188 = arith.mulf %187, %184 : vector<16x32xf32>
    %189 = arith.addf %186, %188 : vector<16x32xf32>
    %190 = vector.extract_strided_slice %182 {offsets = [0, 64], sizes = [16, 32], strides = [1, 1]} : vector<16x96xf32> to vector<16x32xf32>
    %191 = math.tanh %189 : vector<16x32xf32>
    %192 = arith.mulf %190, %191 : vector<16x32xf32>
    %193 = arith.truncf %192 : vector<16x32xf32> to vector<16x32xbf16>
    %194 = arith.index_cast %c6_i32 : i32 to index
    %c0_54 = arith.constant 0 : index
    %c0_55 = arith.constant 0 : index
    %195 = vector.load %arg10[%194, %c0_54, %c0_55] : memref<8x16x32xbf16, #tpu.memory_space<vmem>>, vector<1x16x32xbf16>
    %196 = vector.shape_cast %195 : vector<1x16x32xbf16> to vector<16x32xbf16>
    %197 = vector.shape_cast %193 : vector<16x32xbf16> to vector<1x16x32xbf16>
    tpu.vector_store %arg10[%194, %c0_54, %c0_55], %197 {strides = array<i32>} : memref<8x16x32xbf16, #tpu.memory_space<vmem>>, vector<1x16x32xbf16>,
    %c7_i32 = arith.constant 7 : i32
    %198 = arith.index_cast %c7_i32 : i32 to index
    %c0_56 = arith.constant 0 : index
    %c0_57 = arith.constant 0 : index
    %199 = vector.load %arg1[%198, %c0_56, %c0_57] : memref<8x16x128xf32, #tpu.memory_space<vmem>>, vector<1x16x128xf32>
    %200 = vector.shape_cast %199 : vector<1x16x128xf32> to vector<16x128xf32>
    %201 = arith.truncf %192 : vector<16x32xf32> to vector<16x32xbf16>
    %c0_58 = arith.constant 0 : index
    %c0_59 = arith.constant 0 : index
    %202 = vector.load %arg2[%c0_58, %c0_59] : memref<32x128xbf16, #tpu.memory_space<vmem>>, vector<32x128xbf16>
    %cst_60 = arith.constant dense<0.000000e+00> : vector<16x128xf32>
    %203 = tpu.matmul %201, %202, %cst_60 {dimension_numbers = #tpu.dot_dimension_numbers<[1], [0], [0], [1], [0, 0, 1, 1], [], []>} : vector<16x32xbf16>, vector<32x128xbf16>, vector<16x128xf32> -> vector<16x128xf32>
    %204 = arith.addf %200, %203 : vector<16x128xf32>
    %205 = vector.extract_strided_slice %204 {offsets = [0, 0], sizes = [16, 96], strides = [1, 1]} : vector<16x128xf32> to vector<16x96xf32>
    %206 = arith.negf %205 : vector<16x96xf32>
    %207 = math.exp %206 : vector<16x96xf32>
    %cst_61 = arith.constant 1.000000e+00 : f32
    %208 = vector.broadcast %cst_61 : f32 to vector<16x96xf32>
    %209 = arith.addf %208, %207 : vector<16x96xf32>
    %210 = arith.divf %208, %209 : vector<16x96xf32>
    %211 = vector.extract_strided_slice %204 {offsets = [0, 96], sizes = [16, 32], strides = [1, 1]} : vector<16x128xf32> to vector<16x32xf32>
    %212 = math.tanh %211 : vector<16x32xf32>
    %213 = vector.extract_strided_slice %210 {offsets = [0, 32], sizes = [16, 32], strides = [1, 1]} : vector<16x96xf32> to vector<16x32xf32>
    %214 = arith.mulf %213, %189 : vector<16x32xf32>
    %215 = vector.extract_strided_slice %210 {offsets = [0, 0], sizes = [16, 32], strides = [1, 1]} : vector<16x96xf32> to vector<16x32xf32>
    %216 = arith.mulf %215, %212 : vector<16x32xf32>
    %217 = arith.addf %214, %216 : vector<16x32xf32>
    %218 = vector.extract_strided_slice %210 {offsets = [0, 64], sizes = [16, 32], strides = [1, 1]} : vector<16x96xf32> to vector<16x32xf32>
    %219 = math.tanh %217 : vector<16x32xf32>
    %220 = arith.mulf %218, %219 : vector<16x32xf32>
    %221 = arith.truncf %220 : vector<16x32xf32> to vector<16x32xbf16>
    %222 = arith.index_cast %c7_i32 : i32 to index
    %c0_62 = arith.constant 0 : index
    %c0_63 = arith.constant 0 : index
    %223 = vector.load %arg10[%222, %c0_62, %c0_63] : memref<8x16x32xbf16, #tpu.memory_space<vmem>>, vector<1x16x32xbf16>
    %224 = vector.shape_cast %223 : vector<1x16x32xbf16> to vector<16x32xbf16>
    %225 = vector.shape_cast %221 : vector<16x32xbf16> to vector<1x16x32xbf16>
    tpu.vector_store %arg10[%222, %c0_62, %c0_63], %225 {strides = array<i32>} : memref<8x16x32xbf16, #tpu.memory_space<vmem>>, vector<1x16x32xbf16>,
    %c8_i32 = arith.constant 8 : i32
    %c0_64 = arith.constant 0 : index
    %c0_65 = arith.constant 0 : index
    %c0_66 = arith.constant 0 : index
    %226 = vector.load %arg10[%c0_64, %c0_65, %c0_66] : memref<8x16x32xbf16, #tpu.memory_space<vmem>>, vector<8x16x32xbf16>
    %227 = vector.shape_cast %226 : vector<8x16x32xbf16> to vector<128x32xbf16>
    %c0_67 = arith.constant 0 : index
    %c0_68 = arith.constant 0 : index
    %228 = vector.load %arg3[%c0_67, %c0_68] : memref<32x128xbf16, #tpu.memory_space<vmem>>, vector<32x128xbf16>
    %cst_69 = arith.constant dense<0.000000e+00> : vector<128x128xf32>
    %229 = tpu.matmul %227, %228, %cst_69 {dimension_numbers = #tpu.dot_dimension_numbers<[1], [0], [0], [1], [0, 0, 1, 1], [], []>} : vector<128x32xbf16>, vector<32x128xbf16>, vector<128x128xf32> -> vector<128x128xf32>
    %c0_70 = arith.constant 0 : index
    %c0_71 = arith.constant 0 : index
    %230 = vector.load %arg5[%c0_70, %c0_71] : memref<1x128xf32, #tpu.memory_space<vmem>>, vector<1x128xf32>
    %231 = vector.broadcast %230 : vector<1x128xf32> to vector<128x128xf32>
    %232 = arith.addf %229, %231 : vector<128x128xf32>
    %233 = vector.shape_cast %232 : vector<128x128xf32> to vector<8x16x128xf32>
    %c0_72 = arith.constant 0 : index
    %c0_73 = arith.constant 0 : index
    %c0_74 = arith.constant 0 : index
    %234 = vector.load %arg9[%c0_72, %c0_73, %c0_74] : memref<8x16x128xf32, #tpu.memory_space<vmem>>, vector<8x16x128xf32>
    tpu.vector_store %arg9[%c0_72, %c0_73, %c0_74], %233 {strides = array<i32>} : memref<8x16x128xf32, #tpu.memory_space<vmem>>, vector<8x16x128xf32>,
    %cst_75 = arith.constant 0.000000e+00 : f32
    %235 = vector.broadcast %cst_75 : f32 to vector<16x32xf32>
    %cst_76 = arith.constant 0.000000e+00 : f32
    %236 = vector.broadcast %cst_76 : f32 to vector<16x32xf32>
    %c0_i32_77 = arith.constant 0 : i32
    %237 = arith.index_cast %c0_i32_77 : i32 to index
    %c0_78 = arith.constant 0 : index
    %c0_79 = arith.constant 0 : index
    %238 = vector.load %arg9[%237, %c0_78, %c0_79] : memref<8x16x128xf32, #tpu.memory_space<vmem>>, vector<1x16x128xf32>
    %239 = vector.shape_cast %238 : vector<1x16x128xf32> to vector<16x128xf32>
    %240 = arith.truncf %235 : vector<16x32xf32> to vector<16x32xbf16>
    %c0_80 = arith.constant 0 : index
    %c0_81 = arith.constant 0 : index
    %241 = vector.load %arg4[%c0_80, %c0_81] : memref<32x128xbf16, #tpu.memory_space<vmem>>, vector<32x128xbf16>
    %cst_82 = arith.constant dense<0.000000e+00> : vector<16x128xf32>
    %242 = tpu.matmul %240, %241, %cst_82 {dimension_numbers = #tpu.dot_dimension_numbers<[1], [0], [0], [1], [0, 0, 1, 1], [], []>} : vector<16x32xbf16>, vector<32x128xbf16>, vector<16x128xf32> -> vector<16x128xf32>
    %243 = arith.addf %239, %242 : vector<16x128xf32>
    %244 = vector.extract_strided_slice %243 {offsets = [0, 0], sizes = [16, 96], strides = [1, 1]} : vector<16x128xf32> to vector<16x96xf32>
    %245 = arith.negf %244 : vector<16x96xf32>
    %246 = math.exp %245 : vector<16x96xf32>
    %cst_83 = arith.constant 1.000000e+00 : f32
    %247 = vector.broadcast %cst_83 : f32 to vector<16x96xf32>
    %248 = arith.addf %247, %246 : vector<16x96xf32>
    %249 = arith.divf %247, %248 : vector<16x96xf32>
    %250 = vector.extract_strided_slice %243 {offsets = [0, 96], sizes = [16, 32], strides = [1, 1]} : vector<16x128xf32> to vector<16x32xf32>
    %251 = math.tanh %250 : vector<16x32xf32>
    %252 = vector.extract_strided_slice %249 {offsets = [0, 32], sizes = [16, 32], strides = [1, 1]} : vector<16x96xf32> to vector<16x32xf32>
    %253 = arith.mulf %252, %236 : vector<16x32xf32>
    %254 = vector.extract_strided_slice %249 {offsets = [0, 0], sizes = [16, 32], strides = [1, 1]} : vector<16x96xf32> to vector<16x32xf32>
    %255 = arith.mulf %254, %251 : vector<16x32xf32>
    %256 = arith.addf %253, %255 : vector<16x32xf32>
    %257 = vector.extract_strided_slice %249 {offsets = [0, 64], sizes = [16, 32], strides = [1, 1]} : vector<16x96xf32> to vector<16x32xf32>
    %258 = math.tanh %256 : vector<16x32xf32>
    %259 = arith.mulf %257, %258 : vector<16x32xf32>
    %c1_i32_84 = arith.constant 1 : i32
    %260 = arith.index_cast %c1_i32_84 : i32 to index
    %c0_85 = arith.constant 0 : index
    %c0_86 = arith.constant 0 : index
    %261 = vector.load %arg9[%260, %c0_85, %c0_86] : memref<8x16x128xf32, #tpu.memory_space<vmem>>, vector<1x16x128xf32>
    %262 = vector.shape_cast %261 : vector<1x16x128xf32> to vector<16x128xf32>
    %263 = arith.truncf %259 : vector<16x32xf32> to vector<16x32xbf16>
    %c0_87 = arith.constant 0 : index
    %c0_88 = arith.constant 0 : index
    %264 = vector.load %arg4[%c0_87, %c0_88] : memref<32x128xbf16, #tpu.memory_space<vmem>>, vector<32x128xbf16>
    %cst_89 = arith.constant dense<0.000000e+00> : vector<16x128xf32>
    %265 = tpu.matmul %263, %264, %cst_89 {dimension_numbers = #tpu.dot_dimension_numbers<[1], [0], [0], [1], [0, 0, 1, 1], [], []>} : vector<16x32xbf16>, vector<32x128xbf16>, vector<16x128xf32> -> vector<16x128xf32>
    %266 = arith.addf %262, %265 : vector<16x128xf32>
    %267 = vector.extract_strided_slice %266 {offsets = [0, 0], sizes = [16, 96], strides = [1, 1]} : vector<16x128xf32> to vector<16x96xf32>
    %268 = arith.negf %267 : vector<16x96xf32>
    %269 = math.exp %268 : vector<16x96xf32>
    %cst_90 = arith.constant 1.000000e+00 : f32
    %270 = vector.broadcast %cst_90 : f32 to vector<16x96xf32>
    %271 = arith.addf %270, %269 : vector<16x96xf32>
    %272 = arith.divf %270, %271 : vector<16x96xf32>
    %273 = vector.extract_strided_slice %266 {offsets = [0, 96], sizes = [16, 32], strides = [1, 1]} : vector<16x128xf32> to vector<16x32xf32>
    %274 = math.tanh %273 : vector<16x32xf32>
    %275 = vector.extract_strided_slice %272 {offsets = [0, 32], sizes = [16, 32], strides = [1, 1]} : vector<16x96xf32> to vector<16x32xf32>
    %276 = arith.mulf %275, %256 : vector<16x32xf32>
    %277 = vector.extract_strided_slice %272 {offsets = [0, 0], sizes = [16, 32], strides = [1, 1]} : vector<16x96xf32> to vector<16x32xf32>
    %278 = arith.mulf %277, %274 : vector<16x32xf32>
    %279 = arith.addf %276, %278 : vector<16x32xf32>
    %280 = vector.extract_strided_slice %272 {offsets = [0, 64], sizes = [16, 32], strides = [1, 1]} : vector<16x96xf32> to vector<16x32xf32>
    %281 = math.tanh %279 : vector<16x32xf32>
    %282 = arith.mulf %280, %281 : vector<16x32xf32>
    %c2_i32_91 = arith.constant 2 : i32
    %283 = arith.index_cast %c2_i32_91 : i32 to index
    %c0_92 = arith.constant 0 : index
    %c0_93 = arith.constant 0 : index
    %284 = vector.load %arg9[%283, %c0_92, %c0_93] : memref<8x16x128xf32, #tpu.memory_space<vmem>>, vector<1x16x128xf32>
    %285 = vector.shape_cast %284 : vector<1x16x128xf32> to vector<16x128xf32>
    %286 = arith.truncf %282 : vector<16x32xf32> to vector<16x32xbf16>
    %c0_94 = arith.constant 0 : index
    %c0_95 = arith.constant 0 : index
    %287 = vector.load %arg4[%c0_94, %c0_95] : memref<32x128xbf16, #tpu.memory_space<vmem>>, vector<32x128xbf16>
    %cst_96 = arith.constant dense<0.000000e+00> : vector<16x128xf32>
    %288 = tpu.matmul %286, %287, %cst_96 {dimension_numbers = #tpu.dot_dimension_numbers<[1], [0], [0], [1], [0, 0, 1, 1], [], []>} : vector<16x32xbf16>, vector<32x128xbf16>, vector<16x128xf32> -> vector<16x128xf32>
    %289 = arith.addf %285, %288 : vector<16x128xf32>
    %290 = vector.extract_strided_slice %289 {offsets = [0, 0], sizes = [16, 96], strides = [1, 1]} : vector<16x128xf32> to vector<16x96xf32>
    %291 = arith.negf %290 : vector<16x96xf32>
    %292 = math.exp %291 : vector<16x96xf32>
    %cst_97 = arith.constant 1.000000e+00 : f32
    %293 = vector.broadcast %cst_97 : f32 to vector<16x96xf32>
    %294 = arith.addf %293, %292 : vector<16x96xf32>
    %295 = arith.divf %293, %294 : vector<16x96xf32>
    %296 = vector.extract_strided_slice %289 {offsets = [0, 96], sizes = [16, 32], strides = [1, 1]} : vector<16x128xf32> to vector<16x32xf32>
    %297 = math.tanh %296 : vector<16x32xf32>
    %298 = vector.extract_strided_slice %295 {offsets = [0, 32], sizes = [16, 32], strides = [1, 1]} : vector<16x96xf32> to vector<16x32xf32>
    %299 = arith.mulf %298, %279 : vector<16x32xf32>
    %300 = vector.extract_strided_slice %295 {offsets = [0, 0], sizes = [16, 32], strides = [1, 1]} : vector<16x96xf32> to vector<16x32xf32>
    %301 = arith.mulf %300, %297 : vector<16x32xf32>
    %302 = arith.addf %299, %301 : vector<16x32xf32>
    %303 = vector.extract_strided_slice %295 {offsets = [0, 64], sizes = [16, 32], strides = [1, 1]} : vector<16x96xf32> to vector<16x32xf32>
    %304 = math.tanh %302 : vector<16x32xf32>
    %305 = arith.mulf %303, %304 : vector<16x32xf32>
    %c3_i32_98 = arith.constant 3 : i32
    %306 = arith.index_cast %c3_i32_98 : i32 to index
    %c0_99 = arith.constant 0 : index
    %c0_100 = arith.constant 0 : index
    %307 = vector.load %arg9[%306, %c0_99, %c0_100] : memref<8x16x128xf32, #tpu.memory_space<vmem>>, vector<1x16x128xf32>
    %308 = vector.shape_cast %307 : vector<1x16x128xf32> to vector<16x128xf32>
    %309 = arith.truncf %305 : vector<16x32xf32> to vector<16x32xbf16>
    %c0_101 = arith.constant 0 : index
    %c0_102 = arith.constant 0 : index
    %310 = vector.load %arg4[%c0_101, %c0_102] : memref<32x128xbf16, #tpu.memory_space<vmem>>, vector<32x128xbf16>
    %cst_103 = arith.constant dense<0.000000e+00> : vector<16x128xf32>
    %311 = tpu.matmul %309, %310, %cst_103 {dimension_numbers = #tpu.dot_dimension_numbers<[1], [0], [0], [1], [0, 0, 1, 1], [], []>} : vector<16x32xbf16>, vector<32x128xbf16>, vector<16x128xf32> -> vector<16x128xf32>
    %312 = arith.addf %308, %311 : vector<16x128xf32>
    %313 = vector.extract_strided_slice %312 {offsets = [0, 0], sizes = [16, 96], strides = [1, 1]} : vector<16x128xf32> to vector<16x96xf32>
    %314 = arith.negf %313 : vector<16x96xf32>
    %315 = math.exp %314 : vector<16x96xf32>
    %cst_104 = arith.constant 1.000000e+00 : f32
    %316 = vector.broadcast %cst_104 : f32 to vector<16x96xf32>
    %317 = arith.addf %316, %315 : vector<16x96xf32>
    %318 = arith.divf %316, %317 : vector<16x96xf32>
    %319 = vector.extract_strided_slice %312 {offsets = [0, 96], sizes = [16, 32], strides = [1, 1]} : vector<16x128xf32> to vector<16x32xf32>
    %320 = math.tanh %319 : vector<16x32xf32>
    %321 = vector.extract_strided_slice %318 {offsets = [0, 32], sizes = [16, 32], strides = [1, 1]} : vector<16x96xf32> to vector<16x32xf32>
    %322 = arith.mulf %321, %302 : vector<16x32xf32>
    %323 = vector.extract_strided_slice %318 {offsets = [0, 0], sizes = [16, 32], strides = [1, 1]} : vector<16x96xf32> to vector<16x32xf32>
    %324 = arith.mulf %323, %320 : vector<16x32xf32>
    %325 = arith.addf %322, %324 : vector<16x32xf32>
    %326 = vector.extract_strided_slice %318 {offsets = [0, 64], sizes = [16, 32], strides = [1, 1]} : vector<16x96xf32> to vector<16x32xf32>
    %327 = math.tanh %325 : vector<16x32xf32>
    %328 = arith.mulf %326, %327 : vector<16x32xf32>
    %c4_i32_105 = arith.constant 4 : i32
    %329 = arith.index_cast %c4_i32_105 : i32 to index
    %c0_106 = arith.constant 0 : index
    %c0_107 = arith.constant 0 : index
    %330 = vector.load %arg9[%329, %c0_106, %c0_107] : memref<8x16x128xf32, #tpu.memory_space<vmem>>, vector<1x16x128xf32>
    %331 = vector.shape_cast %330 : vector<1x16x128xf32> to vector<16x128xf32>
    %332 = arith.truncf %328 : vector<16x32xf32> to vector<16x32xbf16>
    %c0_108 = arith.constant 0 : index
    %c0_109 = arith.constant 0 : index
    %333 = vector.load %arg4[%c0_108, %c0_109] : memref<32x128xbf16, #tpu.memory_space<vmem>>, vector<32x128xbf16>
    %cst_110 = arith.constant dense<0.000000e+00> : vector<16x128xf32>
    %334 = tpu.matmul %332, %333, %cst_110 {dimension_numbers = #tpu.dot_dimension_numbers<[1], [0], [0], [1], [0, 0, 1, 1], [], []>} : vector<16x32xbf16>, vector<32x128xbf16>, vector<16x128xf32> -> vector<16x128xf32>
    %335 = arith.addf %331, %334 : vector<16x128xf32>
    %336 = vector.extract_strided_slice %335 {offsets = [0, 0], sizes = [16, 96], strides = [1, 1]} : vector<16x128xf32> to vector<16x96xf32>
    %337 = arith.negf %336 : vector<16x96xf32>
    %338 = math.exp %337 : vector<16x96xf32>
    %cst_111 = arith.constant 1.000000e+00 : f32
    %339 = vector.broadcast %cst_111 : f32 to vector<16x96xf32>
    %340 = arith.addf %339, %338 : vector<16x96xf32>
    %341 = arith.divf %339, %340 : vector<16x96xf32>
    %342 = vector.extract_strided_slice %335 {offsets = [0, 96], sizes = [16, 32], strides = [1, 1]} : vector<16x128xf32> to vector<16x32xf32>
    %343 = math.tanh %342 : vector<16x32xf32>
    %344 = vector.extract_strided_slice %341 {offsets = [0, 32], sizes = [16, 32], strides = [1, 1]} : vector<16x96xf32> to vector<16x32xf32>
    %345 = arith.mulf %344, %325 : vector<16x32xf32>
    %346 = vector.extract_strided_slice %341 {offsets = [0, 0], sizes = [16, 32], strides = [1, 1]} : vector<16x96xf32> to vector<16x32xf32>
    %347 = arith.mulf %346, %343 : vector<16x32xf32>
    %348 = arith.addf %345, %347 : vector<16x32xf32>
    %349 = vector.extract_strided_slice %341 {offsets = [0, 64], sizes = [16, 32], strides = [1, 1]} : vector<16x96xf32> to vector<16x32xf32>
    %350 = math.tanh %348 : vector<16x32xf32>
    %351 = arith.mulf %349, %350 : vector<16x32xf32>
    %c5_i32_112 = arith.constant 5 : i32
    %352 = arith.index_cast %c5_i32_112 : i32 to index
    %c0_113 = arith.constant 0 : index
    %c0_114 = arith.constant 0 : index
    %353 = vector.load %arg9[%352, %c0_113, %c0_114] : memref<8x16x128xf32, #tpu.memory_space<vmem>>, vector<1x16x128xf32>
    %354 = vector.shape_cast %353 : vector<1x16x128xf32> to vector<16x128xf32>
    %355 = arith.truncf %351 : vector<16x32xf32> to vector<16x32xbf16>
    %c0_115 = arith.constant 0 : index
    %c0_116 = arith.constant 0 : index
    %356 = vector.load %arg4[%c0_115, %c0_116] : memref<32x128xbf16, #tpu.memory_space<vmem>>, vector<32x128xbf16>
    %cst_117 = arith.constant dense<0.000000e+00> : vector<16x128xf32>
    %357 = tpu.matmul %355, %356, %cst_117 {dimension_numbers = #tpu.dot_dimension_numbers<[1], [0], [0], [1], [0, 0, 1, 1], [], []>} : vector<16x32xbf16>, vector<32x128xbf16>, vector<16x128xf32> -> vector<16x128xf32>
    %358 = arith.addf %354, %357 : vector<16x128xf32>
    %359 = vector.extract_strided_slice %358 {offsets = [0, 0], sizes = [16, 96], strides = [1, 1]} : vector<16x128xf32> to vector<16x96xf32>
    %360 = arith.negf %359 : vector<16x96xf32>
    %361 = math.exp %360 : vector<16x96xf32>
    %cst_118 = arith.constant 1.000000e+00 : f32
    %362 = vector.broadcast %cst_118 : f32 to vector<16x96xf32>
    %363 = arith.addf %362, %361 : vector<16x96xf32>
    %364 = arith.divf %362, %363 : vector<16x96xf32>
    %365 = vector.extract_strided_slice %358 {offsets = [0, 96], sizes = [16, 32], strides = [1, 1]} : vector<16x128xf32> to vector<16x32xf32>
    %366 = math.tanh %365 : vector<16x32xf32>
    %367 = vector.extract_strided_slice %364 {offsets = [0, 32], sizes = [16, 32], strides = [1, 1]} : vector<16x96xf32> to vector<16x32xf32>
    %368 = arith.mulf %367, %348 : vector<16x32xf32>
    %369 = vector.extract_strided_slice %364 {offsets = [0, 0], sizes = [16, 32], strides = [1, 1]} : vector<16x96xf32> to vector<16x32xf32>
    %370 = arith.mulf %369, %366 : vector<16x32xf32>
    %371 = arith.addf %368, %370 : vector<16x32xf32>
    %372 = vector.extract_strided_slice %364 {offsets = [0, 64], sizes = [16, 32], strides = [1, 1]} : vector<16x96xf32> to vector<16x32xf32>
    %373 = math.tanh %371 : vector<16x32xf32>
    %374 = arith.mulf %372, %373 : vector<16x32xf32>
    %c6_i32_119 = arith.constant 6 : i32
    %375 = arith.index_cast %c6_i32_119 : i32 to index
    %c0_120 = arith.constant 0 : index
    %c0_121 = arith.constant 0 : index
    %376 = vector.load %arg9[%375, %c0_120, %c0_121] : memref<8x16x128xf32, #tpu.memory_space<vmem>>, vector<1x16x128xf32>
    %377 = vector.shape_cast %376 : vector<1x16x128xf32> to vector<16x128xf32>
    %378 = arith.truncf %374 : vector<16x32xf32> to vector<16x32xbf16>
    %c0_122 = arith.constant 0 : index
    %c0_123 = arith.constant 0 : index
    %379 = vector.load %arg4[%c0_122, %c0_123] : memref<32x128xbf16, #tpu.memory_space<vmem>>, vector<32x128xbf16>
    %cst_124 = arith.constant dense<0.000000e+00> : vector<16x128xf32>
    %380 = tpu.matmul %378, %379, %cst_124 {dimension_numbers = #tpu.dot_dimension_numbers<[1], [0], [0], [1], [0, 0, 1, 1], [], []>} : vector<16x32xbf16>, vector<32x128xbf16>, vector<16x128xf32> -> vector<16x128xf32>
    %381 = arith.addf %377, %380 : vector<16x128xf32>
    %382 = vector.extract_strided_slice %381 {offsets = [0, 0], sizes = [16, 96], strides = [1, 1]} : vector<16x128xf32> to vector<16x96xf32>
    %383 = arith.negf %382 : vector<16x96xf32>
    %384 = math.exp %383 : vector<16x96xf32>
    %cst_125 = arith.constant 1.000000e+00 : f32
    %385 = vector.broadcast %cst_125 : f32 to vector<16x96xf32>
    %386 = arith.addf %385, %384 : vector<16x96xf32>
    %387 = arith.divf %385, %386 : vector<16x96xf32>
    %388 = vector.extract_strided_slice %381 {offsets = [0, 96], sizes = [16, 32], strides = [1, 1]} : vector<16x128xf32> to vector<16x32xf32>
    %389 = math.tanh %388 : vector<16x32xf32>
    %390 = vector.extract_strided_slice %387 {offsets = [0, 32], sizes = [16, 32], strides = [1, 1]} : vector<16x96xf32> to vector<16x32xf32>
    %391 = arith.mulf %390, %371 : vector<16x32xf32>
    %392 = vector.extract_strided_slice %387 {offsets = [0, 0], sizes = [16, 32], strides = [1, 1]} : vector<16x96xf32> to vector<16x32xf32>
    %393 = arith.mulf %392, %389 : vector<16x32xf32>
    %394 = arith.addf %391, %393 : vector<16x32xf32>
    %395 = vector.extract_strided_slice %387 {offsets = [0, 64], sizes = [16, 32], strides = [1, 1]} : vector<16x96xf32> to vector<16x32xf32>
    %396 = math.tanh %394 : vector<16x32xf32>
    %397 = arith.mulf %395, %396 : vector<16x32xf32>
    %c7_i32_126 = arith.constant 7 : i32
    %398 = arith.index_cast %c7_i32_126 : i32 to index
    %c0_127 = arith.constant 0 : index
    %c0_128 = arith.constant 0 : index
    %399 = vector.load %arg9[%398, %c0_127, %c0_128] : memref<8x16x128xf32, #tpu.memory_space<vmem>>, vector<1x16x128xf32>
    %400 = vector.shape_cast %399 : vector<1x16x128xf32> to vector<16x128xf32>
    %401 = arith.truncf %397 : vector<16x32xf32> to vector<16x32xbf16>
    %c0_129 = arith.constant 0 : index
    %c0_130 = arith.constant 0 : index
    %402 = vector.load %arg4[%c0_129, %c0_130] : memref<32x128xbf16, #tpu.memory_space<vmem>>, vector<32x128xbf16>
    %cst_131 = arith.constant dense<0.000000e+00> : vector<16x128xf32>
    %403 = tpu.matmul %401, %402, %cst_131 {dimension_numbers = #tpu.dot_dimension_numbers<[1], [0], [0], [1], [0, 0, 1, 1], [], []>} : vector<16x32xbf16>, vector<32x128xbf16>, vector<16x128xf32> -> vector<16x128xf32>
    %404 = arith.addf %400, %403 : vector<16x128xf32>
    %405 = vector.extract_strided_slice %404 {offsets = [0, 0], sizes = [16, 96], strides = [1, 1]} : vector<16x128xf32> to vector<16x96xf32>
    %406 = arith.negf %405 : vector<16x96xf32>
    %407 = math.exp %406 : vector<16x96xf32>
    %cst_132 = arith.constant 1.000000e+00 : f32
    %408 = vector.broadcast %cst_132 : f32 to vector<16x96xf32>
    %409 = arith.addf %408, %407 : vector<16x96xf32>
    %410 = arith.divf %408, %409 : vector<16x96xf32>
    %411 = vector.extract_strided_slice %404 {offsets = [0, 96], sizes = [16, 32], strides = [1, 1]} : vector<16x128xf32> to vector<16x32xf32>
    %412 = math.tanh %411 : vector<16x32xf32>
    %413 = vector.extract_strided_slice %410 {offsets = [0, 32], sizes = [16, 32], strides = [1, 1]} : vector<16x96xf32> to vector<16x32xf32>
    %414 = arith.mulf %413, %394 : vector<16x32xf32>
    %415 = vector.extract_strided_slice %410 {offsets = [0, 0], sizes = [16, 32], strides = [1, 1]} : vector<16x96xf32> to vector<16x32xf32>
    %416 = arith.mulf %415, %412 : vector<16x32xf32>
    %417 = arith.addf %414, %416 : vector<16x32xf32>
    %418 = vector.extract_strided_slice %410 {offsets = [0, 64], sizes = [16, 32], strides = [1, 1]} : vector<16x96xf32> to vector<16x32xf32>
    %419 = math.tanh %417 : vector<16x32xf32>
    %420 = arith.mulf %418, %419 : vector<16x32xf32>
    %c8_i32_133 = arith.constant 8 : i32
    %421 = arith.truncf %420 : vector<16x32xf32> to vector<16x32xbf16>
    %c0_134 = arith.constant 0 : index
    %c0_135 = arith.constant 0 : index
    %422 = vector.load %arg6[%c0_134, %c0_135] : memref<32x4xbf16, #tpu.memory_space<vmem>>, vector<32x4xbf16>
    %cst_136 = arith.constant dense<0.000000e+00> : vector<16x4xf32>
    %423 = tpu.matmul %421, %422, %cst_136 {dimension_numbers = #tpu.dot_dimension_numbers<[1], [0], [0], [1], [0, 0, 1, 1], [], []>} : vector<16x32xbf16>, vector<32x4xbf16>, vector<16x4xf32> -> vector<16x4xf32>
    %c0_137 = arith.constant 0 : index
    %c0_138 = arith.constant 0 : index
    %424 = vector.load %arg7[%c0_137, %c0_138] : memref<1x4xf32, #tpu.memory_space<vmem>>, vector<1x4xf32>
    %425 = vector.broadcast %424 : vector<1x4xf32> to vector<16x4xf32>
    %426 = arith.addf %423, %425 : vector<16x4xf32>
    %c0_139 = arith.constant 0 : index
    %c0_140 = arith.constant 0 : index
    %427 = vector.load %arg8[%c0_139, %c0_140] : memref<16x4xf32, #tpu.memory_space<vmem>>, vector<16x4xf32>
    tpu.vector_store %arg8[%c0_139, %c0_140], %426 {strides = array<i32>} : memref<16x4xf32, #tpu.memory_space<vmem>>, vector<16x4xf32>,
    return
  }
  func.func @transform_0(%arg0: i32) -> (i32, i32, i32) {
    %c0_i32 = arith.constant 0 : i32
    %c0_i32_0 = arith.constant 0 : i32
    %c0_i32_1 = arith.constant 0 : i32
    return %c0_i32, %arg0, %c0_i32_0 : i32, i32, i32
  }
  func.func @transform_1(%arg0: i32) -> (i32, i32) {
    %c0_i32 = arith.constant 0 : i32
    %c0_i32_0 = arith.constant 0 : i32
    %c0_i32_1 = arith.constant 0 : i32
    return %c0_i32, %c0_i32_0 : i32, i32
  }
  func.func @transform_2(%arg0: i32) -> (i32, i32) {
    %c0_i32 = arith.constant 0 : i32
    %c0_i32_0 = arith.constant 0 : i32
    %c0_i32_1 = arith.constant 0 : i32
    return %c0_i32, %c0_i32_0 : i32, i32
  }
  func.func @transform_3(%arg0: i32) -> (i32, i32) {
    %c0_i32 = arith.constant 0 : i32
    %c0_i32_0 = arith.constant 0 : i32
    %c0_i32_1 = arith.constant 0 : i32
    return %c0_i32, %c0_i32_0 : i32, i32
  }
  func.func @transform_4(%arg0: i32) -> (i32, i32) {
    %c0_i32 = arith.constant 0 : i32
    %c0_i32_0 = arith.constant 0 : i32
    %c0_i32_1 = arith.constant 0 : i32
    return %c0_i32, %c0_i32_0 : i32, i32
  }
  func.func @transform_5(%arg0: i32) -> (i32, i32) {
    %c0_i32 = arith.constant 0 : i32
    %c0_i32_0 = arith.constant 0 : i32
    %c0_i32_1 = arith.constant 0 : i32
    return %c0_i32, %c0_i32_0 : i32, i32
  }
  func.func @transform_6(%arg0: i32) -> (i32, i32) {
    %c0_i32 = arith.constant 0 : i32
    %c0_i32_0 = arith.constant 0 : i32
    %c0_i32_1 = arith.constant 0 : i32
    return %c0_i32, %c0_i32_0 : i32, i32
  }
  func.func @transform_7(%arg0: i32) -> (i32, i32) {
    %c0_i32 = arith.constant 0 : i32
    %c0_i32_0 = arith.constant 0 : i32
    return %arg0, %c0_i32 : i32, i32
  }
}

</mosaic_0001>

<llo_original>
// kernel: tpu_custom_call.1
$region0: #{tpu_custom_call.1}
  #allocation0 [shape = 'u32[]', space=smem, size = 0x4, offset = 0x4, fixed_abs, tag = 'smem constant byte address 0x4 - core index']
  #allocation1 [shape = 'u32[144,128]{1,0:T(1,128)}', space=vmem, size = 0x12000, scoped, tag = 'internal scratch']
  #allocation2 [shape = 'f32[8,16,128]{2,1,0:T(8,128)}', space=vmem, size = 0x10000, scoped, tag = 'scratch operand']
  #allocation3 [shape = 'bf16[8,16,32]{2,1,0:T(16,128)(2,1)}', space=vmem, size = 0x8000, scoped, tag = 'scratch operand']
  %s0 = inlined_call_operand.hbm [shape: f32[8,16,128], index: 0, kind: input, shape index: {}]
  %s1 = inlined_call_operand.vmem [shape: bf16[32,128], index: 1, kind: input, shape index: {}]
  %s2 = inlined_call_operand.hbm [shape: bf16[32,128], index: 2, kind: input, shape index: {}]
  %s3 = inlined_call_operand.hbm [shape: bf16[32,128], index: 3, kind: input, shape index: {}]
  %s4 = inlined_call_operand.vmem [shape: f32[1,128], index: 4, kind: input, shape index: {}]
  %s5 = inlined_call_operand.vmem [shape: bf16[32,4], index: 5, kind: input, shape index: {}]
  %s6 = inlined_call_operand.vmem [shape: f32[1,4], index: 6, kind: input, shape index: {}]
  %s7 = inlined_call_operand.vmem [shape: f32[16,4], index: 7, kind: output, shape index: {}]
  %s8 = sld [smem:[#allocation0]]
  $region50: #{tpu_custom_call.1} parent=0
    _
  %s10 = ssub.s32 1, %s8
  %s11 = scalar_select 0, %s10, %s8
  $region1: #{tpu_custom_call.1} parent=0
    #allocation4 [shape = 'u8[65536]{0}', space=vmem, size = 0x10000, scoped, tag = 'input window, operand 0, single buffered']
    #allocation5 [shape = 's32[1]{0}', space=sflag, size = 0x4, scoped, tag = 'scoped memory for tpu_custom_call.1']
    #allocation6 [shape = 'u8[8192]{0}', space=vmem, size = 0x2000, scoped, tag = 'input window, operand 2, single buffered']
    #allocation7 [shape = 's32[1]{0}', space=sflag, size = 0x4, scoped, tag = 'scoped memory for tpu_custom_call.1']
    #allocation8 [shape = 'u8[8192]{0}', space=vmem, size = 0x2000, scoped, tag = 'input window, operand 3, single buffered']
    %12 = vsyncpa [#allocation5], 0
    %13 = vsyncpa [#allocation7], 0
    // Predicated region
    $region2: #{tpu_custom_call.1} parent=1 // pred_check
      _
    $region3: #{tpu_custom_call.1} parent=1 // pred_check_branch
      %15 = sbr.rel (0) target = $region5
    $region4: #{tpu_custom_call.1} parent=1 // pred_region
      %s17 = ssub.s32 2048, 2048
      %18 = vsyncadd [#allocation5], %s17
      %s19 = sshll.u32 [#allocation4], 4
      %s20 = int_to_ptr.vmem [resolvable:$true] %s19
      %25 = dma.hbm_to_vmem [thread:$0]  %s0, 2048, %s20, [#allocation5], 128, 128, 8
    $region5: #{tpu_custom_call.1} parent=1 // pred_fallthru
      _
    // Predicated region
    $region6: #{tpu_custom_call.1} parent=1 // pred_check
      _
    $region7: #{tpu_custom_call.1} parent=1 // pred_check_branch
      %27 = sbr.rel (0) target = $region9
    $region8: #{tpu_custom_call.1} parent=1 // pred_region
      _
    $region9: #{tpu_custom_call.1} parent=1 // pred_fallthru
      _
    // Predicated region
    $region10: #{tpu_custom_call.1} parent=1 // pred_check
      _
    $region11: #{tpu_custom_call.1} parent=1 // pred_check_branch
      %29 = sbr.rel (0) target = $region13
    $region12: #{tpu_custom_call.1} parent=1 // pred_region
      %s31 = ssub.s32 256, 256
      %32 = vsyncadd [#allocation7], %s31
      %s33 = sshll.u32 [#allocation6], 4
      %s34 = int_to_ptr.vmem [resolvable:$true] %s33
      %39 = dma.hbm_to_vmem [thread:$0]  %s2, 256, %s34, [#allocation7], 64, 64, 4
    $region13: #{tpu_custom_call.1} parent=1 // pred_fallthru
      _
    // Predicated region
    $region14: #{tpu_custom_call.1} parent=1 // pred_check
      _
    $region15: #{tpu_custom_call.1} parent=1 // pred_check_branch
      %41 = sbr.rel (0) target = $region17
    $region16: #{tpu_custom_call.1} parent=1 // pred_region
      %s43 = ssub.s32 256, 256
      %44 = vsyncadd [#allocation7], %s43
      %s45 = sshll.u32 [#allocation8], 4
      %s46 = int_to_ptr.vmem [resolvable:$true] %s45
      %51 = dma.hbm_to_vmem [thread:$0]  %s3, 256, %s46, [#allocation7], 64, 64, 4
    $region17: #{tpu_custom_call.1} parent=1 // pred_fallthru
      _
    // Predicated region
    $region18: #{tpu_custom_call.1} parent=1 // pred_check
      _
    $region19: #{tpu_custom_call.1} parent=1 // pred_check_branch
      %53 = sbr.rel (0) target = $region21
    $region20: #{tpu_custom_call.1} parent=1 // pred_region
      _
    $region21: #{tpu_custom_call.1} parent=1 // pred_fallthru
      _
    // Predicated region
    $region22: #{tpu_custom_call.1} parent=1 // pred_check
      _
    $region23: #{tpu_custom_call.1} parent=1 // pred_check_branch
      %55 = sbr.rel (0) target = $region25
    $region24: #{tpu_custom_call.1} parent=1 // pred_region
      _
    $region25: #{tpu_custom_call.1} parent=1 // pred_fallthru
      _
    // Predicated region
    $region26: #{tpu_custom_call.1} parent=1 // pred_check
      _
    $region27: #{tpu_custom_call.1} parent=1 // pred_check_branch
      %57 = sbr.rel (0) target = $region29
    $region28: #{tpu_custom_call.1} parent=1 // pred_region
      _
    $region29: #{tpu_custom_call.1} parent=1 // pred_fallthru
      _
    // Predicated region
    $region30: #{tpu_custom_call.1} parent=1 // pred_check
      _
    $region31: #{tpu_custom_call.1} parent=1 // pred_check_branch
      %59 = sbr.rel (0) target = $region33
    $region32: #{tpu_custom_call.1} parent=1 // pred_region
      %60 = dma.done [#allocation5], 2048
    $region33: #{tpu_custom_call.1} parent=1 // pred_fallthru
      _
    // Predicated region
    $region34: #{tpu_custom_call.1} parent=1 // pred_check
      _
    $region35: #{tpu_custom_call.1} parent=1 // pred_check_branch
      %62 = sbr.rel (0) target = $region37
    $region36: #{tpu_custom_call.1} parent=1 // pred_region
      %63 = dma.done [#allocation7], 256
    $region37: #{tpu_custom_call.1} parent=1 // pred_fallthru
      _
    // Predicated region
    $region38: #{tpu_custom_call.1} parent=1 // pred_check
      _
    $region39: #{tpu_custom_call.1} parent=1 // pred_check_branch
      %65 = sbr.rel (0) target = $region41
    $region40: #{tpu_custom_call.1} parent=1 // pred_region
      %66 = dma.done [#allocation7], 256
    $region41: #{tpu_custom_call.1} parent=1 // pred_fallthru
      _
    %v68 = vld [vmem:[#allocation4] sm:$0xff]
    %v69 = vld [vmem:[#allocation4 + $0x8] sm:$0xff]
    %v70 = vld [vmem:[%s1] sm:$0xf]
    %v71 = vld [vmem:[%s1 + $0x4] sm:$0xf]
    %v72 = vld [vmem:[%s1 + $0x8] sm:$0xf]
    %v73 = vld [vmem:[%s1 + $0xc] sm:$0xf]
    %v78 = vunpack.c.l.b16 %v70
    %v79 = vunpack.c.l.b16 %v71
    %v80 = vunpack.c.l.b16 %v72
    %v81 = vunpack.c.l.b16 %v73
    %v82 = vpack.c.b16 %v79, %v78
    %v83 = vpack.c.b16 %v81, %v80
    %vm86 = vcmask 261120
    %v88 = vsel %vm86, 0, 0
    %90 = vmatprep.subr.bf16.mxu0 0
    %91 = vmatpush1.bf16.msra.mxu0 %v82
    %92 = vmatprep.subr.bf16.mxu0 0
    %93 = vmatpush1.bf16.msra.mxu0 %v83
    %94 = vmatprep.subr.bf16.mxu0 0
    %95 = vmatpush1.bf16.msra.mxu0 0
    %96 = vmatprep.subr.bf16.mxu0 0
    %97 = vmatpush1.bf16.msra.mxu0 0
    %98 = vmatprep.subr.bf16.mxu0 0
    %99 = vmatpush1.bf16.msra.mxu0 0
    %100 = vmatprep.subr.bf16.mxu0 0
    %101 = vmatpush1.bf16.msra.mxu0 0
    %102 = vmatprep.subr.bf16.mxu0 0
    %103 = vmatpush1.bf16.msra.mxu0 0
    %104 = vmatprep.subr.bf16.mxu0 0
    %105 = vmatpush1.bf16.msra.mxu0 0
    %106 = vmatprep.subr.bf16.mxu0 0
    %107 = vmatpush1.bf16.msra.mxu0 0
    %108 = vmatprep.subr.bf16.mxu0 0
    %109 = vmatpush1.bf16.msra.mxu0 0
    %110 = vmatprep.subr.bf16.mxu0 0
    %111 = vmatpush1.bf16.msra.mxu0 0
    %112 = vmatprep.subr.bf16.mxu0 0
    %113 = vmatpush1.bf16.msra.mxu0 0
    %114 = vmatprep.subr.bf16.mxu0 0
    %115 = vmatpush1.bf16.msra.mxu0 0
    %116 = vmatprep.subr.bf16.mxu0 0
    %117 = vmatpush1.bf16.msra.mxu0 0
    %118 = vmatprep.subr.bf16.mxu0 0
    %119 = vmatpush1.bf16.msra.mxu0 0
    %120 = vmatprep.subr.bf16.mxu0 0
    %121 = vmatpush1.bf16.msra.mxu0 0
    %122 = vmatprep.mubr.bf16.mxu0 0
    %123 = vmatmul.mubr.bf16.gmra.mrb[0].mxu0 %v88
    %v124 = vpop.f32.mrb[0].mxu0
    %v125 = vadd.f32 0.0, %v124
    %v126 = vpop.f32.mrb[0].mxu0
    %v127 = vpop.f32.mrb[0].mxu0
    %v128 = vadd.f32 0.0, %v127
    %v129 = vpop.f32.mrb[0].mxu0
    %130 = vdwg.mxu0
    %v131 = vadd.f32 %v68, %v125
    %v132 = vadd.f32 %v69, %v128
    %v133 = vxor.u32 %v131, 2147483648
    %v134 = vxor.u32 %v132, 2147483648
    %v135 = vmul.f32 %v133, 1.442695
    %v136 = vpow.pop %v135
    %v137 = vmul.f32 %v134, 1.442695
    %v138 = vpow.pop %v137
    %v139 = vadd.f32 %v136, 1.0
    %v140 = vadd.f32 %v138, 1.0
    %v141 = vrcp.pop %v139
    %v142 = vmul.f32 1.0, %v141
    %v143 = vrcp.pop %v140
    %v144 = vmul.f32 1.0, %v143
    %v145 = vtanh.pop %v131
    %v146 = vtanh.pop %v132
    %v147 = vmul.f32 %v142, 0.0
    %v148 = vmul.f32 %v144, 0.0
    %151 = vrot.lane.b32.xlu0 %v145, 32
    %v152 = vpop.permute.xlu0 %151
    %153 = vrot.lane.b32.xlu0 %v146, 32
    %v154 = vpop.permute.xlu0 %153
    %v157 = vmul.f32 %v142, %v152
    %v158 = vmul.f32 %v144, %v154
    %161 = vrot.lane.b32.xlu0 %v157, 32
    %v162 = vpop.permute.xlu0 %161
    %163 = vrot.lane.b32.xlu0 %v158, 32
    %v164 = vpop.permute.xlu0 %163
    %v167 = vadd.f32 %v147, %v162
    %v168 = vadd.f32 %v148, %v164
    %v169 = vtanh.pop %v167
    %v170 = vtanh.pop %v168
    %173 = vrot.lane.b32.xlu0 %v169, 32
    %v174 = vpop.permute.xlu0 %173
    %175 = vrot.lane.b32.xlu0 %v170, 32
    %v176 = vpop.permute.xlu0 %175
    %v179 = vmul.f32 %v142, %v174
    %v180 = vmul.f32 %v144, %v176
    %v181 = vpack.c.bf16 %v180, %v179
    %183 = vrot.lane.b32.xlu0 %v181, 64
    %v184 = vpop.permute.xlu0 %183
    %186 = vst.msk [vmem:[#allocation3] sm:$0xff] %vm86, %v184
    %s187 = scalar_lea.vmem [#allocation4], 16
    %v188 = vld [vmem:[%s187] sm:$0xff]
    %v189 = vld [vmem:[%s187 + $0x8] sm:$0xff]
    %v190 = vld [vmem:[%s1] sm:$0xf]
    %v191 = vld [vmem:[%s1 + $0x4] sm:$0xf]
    %v192 = vld [vmem:[%s1 + $0x8] sm:$0xf]
    %v193 = vld [vmem:[%s1 + $0xc] sm:$0xf]
    %v198 = vunpack.c.l.b16 %v190
    %v199 = vunpack.c.l.b16 %v191
    %v200 = vunpack.c.l.b16 %v192
    %v201 = vunpack.c.l.b16 %v193
    %v202 = vpack.c.b16 %v199, %v198
    %v203 = vpack.c.b16 %v201, %v200
    %v207 = vsel %vm86, %v184, 0
    %209 = vmatprep.subr.bf16.mxu0 0
    %210 = vmatpush1.bf16.msra.mxu0 %v202
    %211 = vmatprep.subr.bf16.mxu0 0
    %212 = vmatpush1.bf16.msra.mxu0 %v203
    %213 = vmatprep.subr.bf16.mxu0 0
    %214 = vmatpush1.bf16.msra.mxu0 0
    %215 = vmatprep.subr.bf16.mxu0 0
    %216 = vmatpush1.bf16.msra.mxu0 0
    %217 = vmatprep.subr.bf16.mxu0 0
    %218 = vmatpush1.bf16.msra.mxu0 0
    %219 = vmatprep.subr.bf16.mxu0 0
    %220 = vmatpush1.bf16.msra.mxu0 0
    %221 = vmatprep.subr.bf16.mxu0 0
    %222 = vmatpush1.bf16.msra.mxu0 0
    %223 = vmatprep.subr.bf16.mxu0 0
    %224 = vmatpush1.bf16.msra.mxu0 0
    %225 = vmatprep.subr.bf16.mxu0 0
    %226 = vmatpush1.bf16.msra.mxu0 0
    %227 = vmatprep.subr.bf16.mxu0 0
    %228 = vmatpush1.bf16.msra.mxu0 0
    %229 = vmatprep.subr.bf16.mxu0 0
    %230 = vmatpush1.bf16.msra.mxu0 0
    %231 = vmatprep.subr.bf16.mxu0 0
    %232 = vmatpush1.bf16.msra.mxu0 0
    %233 = vmatprep.subr.bf16.mxu0 0
    %234 = vmatpush1.bf16.msra.mxu0 0
    %235 = vmatprep.subr.bf16.mxu0 0
    %236 = vmatpush1.bf16.msra.mxu0 0
    %237 = vmatprep.subr.bf16.mxu0 0
    %238 = vmatpush1.bf16.msra.mxu0 0
    %239 = vmatprep.subr.bf16.mxu0 0
    %240 = vmatpush1.bf16.msra.mxu0 0
    %241 = vmatprep.mubr.bf16.mxu0 0
    %242 = vmatmul.mubr.bf16.gmra.mrb[0].mxu0 %v207
    %v243 = vpop.f32.mrb[0].mxu0
    %v244 = vadd.f32 0.0, %v243
    %v245 = vpop.f32.mrb[0].mxu0
    %v246 = vpop.f32.mrb[0].mxu0
    %v247 = vadd.f32 0.0, %v246
    %v248 = vpop.f32.mrb[0].mxu0
    %249 = vdwg.mxu0
    %v250 = vadd.f32 %v188, %v244
    %v251 = vadd.f32 %v189, %v247
    %v252 = vxor.u32 %v250, 2147483648
    %v253 = vxor.u32 %v251, 2147483648
    %v254 = vmul.f32 %v252, 1.442695
    %v255 = vpow.pop %v254
    %v256 = vmul.f32 %v253, 1.442695
    %v257 = vpow.pop %v256
    %v258 = vadd.f32 %v255, 1.0
    %v259 = vadd.f32 %v257, 1.0
    %v260 = vrcp.pop %v258
    %v261 = vmul.f32 1.0, %v260
    %v262 = vrcp.pop %v259
    %v263 = vmul.f32 1.0, %v262
    %v264 = vtanh.pop %v250
    %v265 = vtanh.pop %v251
    %v266 = vmul.f32 %v261, %v167
    %v267 = vmul.f32 %v263, %v168
    %270 = vrot.lane.b32.xlu0 %v264, 32
    %v271 = vpop.permute.xlu0 %270
    %272 = vrot.lane.b32.xlu0 %v265, 32
    %v273 = vpop.permute.xlu0 %272
    %v276 = vmul.f32 %v261, %v271
    %v277 = vmul.f32 %v263, %v273
    %280 = vrot.lane.b32.xlu0 %v276, 32
    %v281 = vpop.permute.xlu0 %280
    %282 = vrot.lane.b32.xlu0 %v277, 32
    %v283 = vpop.permute.xlu0 %282
    %v286 = vadd.f32 %v266, %v281
    %v287 = vadd.f32 %v267, %v283
    %v288 = vtanh.pop %v286
    %v289 = vtanh.pop %v287
    %292 = vrot.lane.b32.xlu0 %v288, 32
    %v293 = vpop.permute.xlu0 %292
    %294 = vrot.lane.b32.xlu0 %v289, 32
    %v295 = vpop.permute.xlu0 %294
    %v298 = vmul.f32 %v261, %v293
    %v299 = vmul.f32 %v263, %v295
    %v300 = vpack.c.bf16 %v299, %v298
    %302 = vrot.lane.b32.xlu0 %v300, 64
    %v303 = vpop.permute.xlu0 %302
    %s305 = scalar_lea.vmem [#allocation3], 8
    %306 = vst.msk [vmem:[%s305] sm:$0xff] %vm86, %v303
    %s307 = scalar_lea.vmem [#allocation4], 32
    %v308 = vld [vmem:[%s307] sm:$0xff]
    %v309 = vld [vmem:[%s307 + $0x8] sm:$0xff]
    %v310 = vld [vmem:[%s1] sm:$0xf]
    %v311 = vld [vmem:[%s1 + $0x4] sm:$0xf]
    %v312 = vld [vmem:[%s1 + $0x8] sm:$0xf]
    %v313 = vld [vmem:[%s1 + $0xc] sm:$0xf]
    %v318 = vunpack.c.l.b16 %v310
    %v319 = vunpack.c.l.b16 %v311
    %v320 = vunpack.c.l.b16 %v312
    %v321 = vunpack.c.l.b16 %v313
    %v322 = vpack.c.b16 %v319, %v318
    %v323 = vpack.c.b16 %v321, %v320
    %v327 = vsel %vm86, %v303, 0
    %329 = vmatprep.subr.bf16.mxu0 0
    %330 = vmatpush1.bf16.msra.mxu0 %v322
    %331 = vmatprep.subr.bf16.mxu0 0
    %332 = vmatpush1.bf16.msra.mxu0 %v323
    %333 = vmatprep.subr.bf16.mxu0 0
    %334 = vmatpush1.bf16.msra.mxu0 0
    %335 = vmatprep.subr.bf16.mxu0 0
    %336 = vmatpush1.bf16.msra.mxu0 0
    %337 = vmatprep.subr.bf16.mxu0 0
    %338 = vmatpush1.bf16.msra.mxu0 0
    %339 = vmatprep.subr.bf16.mxu0 0
    %340 = vmatpush1.bf16.msra.mxu0 0
    %341 = vmatprep.subr.bf16.mxu0 0
    %342 = vmatpush1.bf16.msra.mxu0 0
    %343 = vmatprep.subr.bf16.mxu0 0
    %344 = vmatpush1.bf16.msra.mxu0 0
    %345 = vmatprep.subr.bf16.mxu0 0
    %346 = vmatpush1.bf16.msra.mxu0 0
    %347 = vmatprep.subr.bf16.mxu0 0
    %348 = vmatpush1.bf16.msra.mxu0 0
    %349 = vmatprep.subr.bf16.mxu0 0
    %350 = vmatpush1.bf16.msra.mxu0 0
    %351 = vmatprep.subr.bf16.mxu0 0
    %352 = vmatpush1.bf16.msra.mxu0 0
    %353 = vmatprep.subr.bf16.mxu0 0
    %354 = vmatpush1.bf16.msra.mxu0 0
    %355 = vmatprep.subr.bf16.mxu0 0
    %356 = vmatpush1.bf16.msra.mxu0 0
    %357 = vmatprep.subr.bf16.mxu0 0
    %358 = vmatpush1.bf16.msra.mxu0 0
    %359 = vmatprep.subr.bf16.mxu0 0
    %360 = vmatpush1.bf16.msra.mxu0 0
    %361 = vmatprep.mubr.bf16.mxu0 0
    %362 = vmatmul.mubr.bf16.gmra.mrb[0].mxu0 %v327
    %v363 = vpop.f32.mrb[0].mxu0
    %v364 = vadd.f32 0.0, %v363
    %v365 = vpop.f32.mrb[0].mxu0
    %v366 = vpop.f32.mrb[0].mxu0
    %v367 = vadd.f32 0.0, %v366
    %v368 = vpop.f32.mrb[0].mxu0
    %369 = vdwg.mxu0
    %v370 = vadd.f32 %v308, %v364
    %v371 = vadd.f32 %v309, %v367
    %v372 = vxor.u32 %v370, 2147483648
    %v373 = vxor.u32 %v371, 2147483648
    %v374 = vmul.f32 %v372, 1.442695
    %v375 = vpow.pop %v374
    %v376 = vmul.f32 %v373, 1.442695
    %v377 = vpow.pop %v376
    %v378 = vadd.f32 %v375, 1.0
    %v379 = vadd.f32 %v377, 1.0
    %v380 = vrcp.pop %v378
    %v381 = vmul.f32 1.0, %v380
    %v382 = vrcp.pop %v379
    %v383 = vmul.f32 1.0, %v382
    %v384 = vtanh.pop %v370
    %v385 = vtanh.pop %v371
    %v386 = vmul.f32 %v381, %v286
    %v387 = vmul.f32 %v383, %v287
    %390 = vrot.lane.b32.xlu0 %v384, 32
    %v391 = vpop.permute.xlu0 %390
    %392 = vrot.lane.b32.xlu0 %v385, 32
    %v393 = vpop.permute.xlu0 %392
    %v396 = vmul.f32 %v381, %v391
    %v397 = vmul.f32 %v383, %v393
    %400 = vrot.lane.b32.xlu0 %v396, 32
    %v401 = vpop.permute.xlu0 %400
    %402 = vrot.lane.b32.xlu0 %v397, 32
    %v403 = vpop.permute.xlu0 %402
    %v406 = vadd.f32 %v386, %v401
    %v407 = vadd.f32 %v387, %v403
    %v408 = vtanh.pop %v406
    %v409 = vtanh.pop %v407
    %412 = vrot.lane.b32.xlu0 %v408, 32
    %v413 = vpop.permute.xlu0 %412
    %414 = vrot.lane.b32.xlu0 %v409, 32
    %v415 = vpop.permute.xlu0 %414
    %v418 = vmul.f32 %v381, %v413
    %v419 = vmul.f32 %v383, %v415
    %v420 = vpack.c.bf16 %v419, %v418
    %422 = vrot.lane.b32.xlu0 %v420, 64
    %v423 = vpop.permute.xlu0 %422
    %s425 = scalar_lea.vmem [#allocation3], 16
    %426 = vst.msk [vmem:[%s425] sm:$0xff] %vm86, %v423
    %s427 = scalar_lea.vmem [#allocation4], 48
    %v428 = vld [vmem:[%s427] sm:$0xff]
    %v429 = vld [vmem:[%s427 + $0x8] sm:$0xff]
    %v430 = vld [vmem:[%s1] sm:$0xf]
    %v431 = vld [vmem:[%s1 + $0x4] sm:$0xf]
    %v432 = vld [vmem:[%s1 + $0x8] sm:$0xf]
    %v433 = vld [vmem:[%s1 + $0xc] sm:$0xf]
    %v438 = vunpack.c.l.b16 %v430
    %v439 = vunpack.c.l.b16 %v431
    %v440 = vunpack.c.l.b16 %v432
    %v441 = vunpack.c.l.b16 %v433
    %v442 = vpack.c.b16 %v439, %v438
    %v443 = vpack.c.b16 %v441, %v440
    %v447 = vsel %vm86, %v423, 0
    %449 = vmatprep.subr.bf16.mxu0 0
    %450 = vmatpush1.bf16.msra.mxu0 %v442
    %451 = vmatprep.subr.bf16.mxu0 0
    %452 = vmatpush1.bf16.msra.mxu0 %v443
    %453 = vmatprep.subr.bf16.mxu0 0
    %454 = vmatpush1.bf16.msra.mxu0 0
    %455 = vmatprep.subr.bf16.mxu0 0
    %456 = vmatpush1.bf16.msra.mxu0 0
    %457 = vmatprep.subr.bf16.mxu0 0
    %458 = vmatpush1.bf16.msra.mxu0 0
    %459 = vmatprep.subr.bf16.mxu0 0
    %460 = vmatpush1.bf16.msra.mxu0 0
    %461 = vmatprep.subr.bf16.mxu0 0
    %462 = vmatpush1.bf16.msra.mxu0 0
    %463 = vmatprep.subr.bf16.mxu0 0
    %464 = vmatpush1.bf16.msra.mxu0 0
    %465 = vmatprep.subr.bf16.mxu0 0
    %466 = vmatpush1.bf16.msra.mxu0 0
    %467 = vmatprep.subr.bf16.mxu0 0
    %468 = vmatpush1.bf16.msra.mxu0 0
    %469 = vmatprep.subr.bf16.mxu0 0
    %470 = vmatpush1.bf16.msra.mxu0 0
    %471 = vmatprep.subr.bf16.mxu0 0
    %472 = vmatpush1.bf16.msra.mxu0 0
    %473 = vmatprep.subr.bf16.mxu0 0
    %474 = vmatpush1.bf16.msra.mxu0 0
    %475 = vmatprep.subr.bf16.mxu0 0
    %476 = vmatpush1.bf16.msra.mxu0 0
    %477 = vmatprep.subr.bf16.mxu0 0
    %478 = vmatpush1.bf16.msra.mxu0 0
    %479 = vmatprep.subr.bf16.mxu0 0
    %480 = vmatpush1.bf16.msra.mxu0 0
    %481 = vmatprep.mubr.bf16.mxu0 0
    %482 = vmatmul.mubr.bf16.gmra.mrb[0].mxu0 %v447
    %v483 = vpop.f32.mrb[0].mxu0
    %v484 = vadd.f32 0.0, %v483
    %v485 = vpop.f32.mrb[0].mxu0
    %v486 = vpop.f32.mrb[0].mxu0
    %v487 = vadd.f32 0.0, %v486
    %v488 = vpop.f32.mrb[0].mxu0
    %489 = vdwg.mxu0
    %v490 = vadd.f32 %v428, %v484
    %v491 = vadd.f32 %v429, %v487
    %v492 = vxor.u32 %v490, 2147483648
    %v493 = vxor.u32 %v491, 2147483648
    %v494 = vmul.f32 %v492, 1.442695
    %v495 = vpow.pop %v494
    %v496 = vmul.f32 %v493, 1.442695
    %v497 = vpow.pop %v496
    %v498 = vadd.f32 %v495, 1.0
    %v499 = vadd.f32 %v497, 1.0
    %v500 = vrcp.pop %v498
    %v501 = vmul.f32 1.0, %v500
    %v502 = vrcp.pop %v499
    %v503 = vmul.f32 1.0, %v502
    %v504 = vtanh.pop %v490
    %v505 = vtanh.pop %v491
    %v506 = vmul.f32 %v501, %v406
    %v507 = vmul.f32 %v503, %v407
    %510 = vrot.lane.b32.xlu0 %v504, 32
    %v511 = vpop.permute.xlu0 %510
    %512 = vrot.lane.b32.xlu0 %v505, 32
    %v513 = vpop.permute.xlu0 %512
    %v516 = vmul.f32 %v501, %v511
    %v517 = vmul.f32 %v503, %v513
    %520 = vrot.lane.b32.xlu0 %v516, 32
    %v521 = vpop.permute.xlu0 %520
    %522 = vrot.lane.b32.xlu0 %v517, 32
    %v523 = vpop.permute.xlu0 %522
    %v526 = vadd.f32 %v506, %v521
    %v527 = vadd.f32 %v507, %v523
    %v528 = vtanh.pop %v526
    %v529 = vtanh.pop %v527
    %532 = vrot.lane.b32.xlu0 %v528, 32
    %v533 = vpop.permute.xlu0 %532
    %534 = vrot.lane.b32.xlu0 %v529, 32
    %v535 = vpop.permute.xlu0 %534
    %v538 = vmul.f32 %v501, %v533
    %v539 = vmul.f32 %v503, %v535
    %v540 = vpack.c.bf16 %v539, %v538
    %542 = vrot.lane.b32.xlu0 %v540, 64
    %v543 = vpop.permute.xlu0 %542
    %s545 = scalar_lea.vmem [#allocation3], 24
    %546 = vst.msk [vmem:[%s545] sm:$0xff] %vm86, %v543
    %s547 = scalar_lea.vmem [#allocation4], 64
    %v548 = vld [vmem:[%s547] sm:$0xff]
    %v549 = vld [vmem:[%s547 + $0x8] sm:$0xff]
    %v550 = vld [vmem:[%s1] sm:$0xf]
    %v551 = vld [vmem:[%s1 + $0x4] sm:$0xf]
    %v552 = vld [vmem:[%s1 + $0x8] sm:$0xf]
    %v553 = vld [vmem:[%s1 + $0xc] sm:$0xf]
    %v558 = vunpack.c.l.b16 %v550
    %v559 = vunpack.c.l.b16 %v551
    %v560 = vunpack.c.l.b16 %v552
    %v561 = vunpack.c.l.b16 %v553
    %v562 = vpack.c.b16 %v559, %v558
    %v563 = vpack.c.b16 %v561, %v560
    %v567 = vsel %vm86, %v543, 0
    %569 = vmatprep.subr.bf16.mxu0 0
    %570 = vmatpush1.bf16.msra.mxu0 %v562
    %571 = vmatprep.subr.bf16.mxu0 0
    %572 = vmatpush1.bf16.msra.mxu0 %v563
    %573 = vmatprep.subr.bf16.mxu0 0
    %574 = vmatpush1.bf16.msra.mxu0 0
    %575 = vmatprep.subr.bf16.mxu0 0
    %576 = vmatpush1.bf16.msra.mxu0 0
    %577 = vmatprep.subr.bf16.mxu0 0
    %578 = vmatpush1.bf16.msra.mxu0 0
    %579 = vmatprep.subr.bf16.mxu0 0
    %580 = vmatpush1.bf16.msra.mxu0 0
    %581 = vmatprep.subr.bf16.mxu0 0
    %582 = vmatpush1.bf16.msra.mxu0 0
    %583 = vmatprep.subr.bf16.mxu0 0
    %584 = vmatpush1.bf16.msra.mxu0 0
    %585 = vmatprep.subr.bf16.mxu0 0
    %586 = vmatpush1.bf16.msra.mxu0 0
    %587 = vmatprep.subr.bf16.mxu0 0
    %588 = vmatpush1.bf16.msra.mxu0 0
    %589 = vmatprep.subr.bf16.mxu0 0
    %590 = vmatpush1.bf16.msra.mxu0 0
    %591 = vmatprep.subr.bf16.mxu0 0
    %592 = vmatpush1.bf16.msra.mxu0 0
    %593 = vmatprep.subr.bf16.mxu0 0
    %594 = vmatpush1.bf16.msra.mxu0 0
    %595 = vmatprep.subr.bf16.mxu0 0
    %596 = vmatpush1.bf16.msra.mxu0 0
    %597 = vmatprep.subr.bf16.mxu0 0
    %598 = vmatpush1.bf16.msra.mxu0 0
    %599 = vmatprep.subr.bf16.mxu0 0
    %600 = vmatpush1.bf16.msra.mxu0 0
    %601 = vmatprep.mubr.bf16.mxu0 0
    %602 = vmatmul.mubr.bf16.gmra.mrb[0].mxu0 %v567
    %v603 = vpop.f32.mrb[0].mxu0
    %v604 = vadd.f32 0.0, %v603
    %v605 = vpop.f32.mrb[0].mxu0
    %v606 = vpop.f32.mrb[0].mxu0
    %v607 = vadd.f32 0.0, %v606
    %v608 = vpop.f32.mrb[0].mxu0
    %609 = vdwg.mxu0
    %v610 = vadd.f32 %v548, %v604
    %v611 = vadd.f32 %v549, %v607
    %v612 = vxor.u32 %v610, 2147483648
    %v613 = vxor.u32 %v611, 2147483648
    %v614 = vmul.f32 %v612, 1.442695
    %v615 = vpow.pop %v614
    %v616 = vmul.f32 %v613, 1.442695
    %v617 = vpow.pop %v616
    %v618 = vadd.f32 %v615, 1.0
    %v619 = vadd.f32 %v617, 1.0
    %v620 = vrcp.pop %v618
    %v621 = vmul.f32 1.0, %v620
    %v622 = vrcp.pop %v619
    %v623 = vmul.f32 1.0, %v622
    %v624 = vtanh.pop %v610
    %v625 = vtanh.pop %v611
    %v626 = vmul.f32 %v621, %v526
    %v627 = vmul.f32 %v623, %v527
    %630 = vrot.lane.b32.xlu0 %v624, 32
    %v631 = vpop.permute.xlu0 %630
    %632 = vrot.lane.b32.xlu0 %v625, 32
    %v633 = vpop.permute.xlu0 %632
    %v636 = vmul.f32 %v621, %v631
    %v637 = vmul.f32 %v623, %v633
    %640 = vrot.lane.b32.xlu0 %v636, 32
    %v641 = vpop.permute.xlu0 %640
    %642 = vrot.lane.b32.xlu0 %v637, 32
    %v643 = vpop.permute.xlu0 %642
    %v646 = vadd.f32 %v626, %v641
    %v647 = vadd.f32 %v627, %v643
    %v648 = vtanh.pop %v646
    %v649 = vtanh.pop %v647
    %652 = vrot.lane.b32.xlu0 %v648, 32
    %v653 = vpop.permute.xlu0 %652
    %654 = vrot.lane.b32.xlu0 %v649, 32
    %v655 = vpop.permute.xlu0 %654
    %v658 = vmul.f32 %v621, %v653
    %v659 = vmul.f32 %v623, %v655
    %v660 = vpack.c.bf16 %v659, %v658
    %662 = vrot.lane.b32.xlu0 %v660, 64
    %v663 = vpop.permute.xlu0 %662
    %s665 = scalar_lea.vmem [#allocation3], 32
    %666 = vst.msk [vmem:[%s665] sm:$0xff] %vm86, %v663
    %s667 = scalar_lea.vmem [#allocation4], 80
    %v668 = vld [vmem:[%s667] sm:$0xff]
    %v669 = vld [vmem:[%s667 + $0x8] sm:$0xff]
    %v670 = vld [vmem:[%s1] sm:$0xf]
    %v671 = vld [vmem:[%s1 + $0x4] sm:$0xf]
    %v672 = vld [vmem:[%s1 + $0x8] sm:$0xf]
    %v673 = vld [vmem:[%s1 + $0xc] sm:$0xf]
    %v678 = vunpack.c.l.b16 %v670
    %v679 = vunpack.c.l.b16 %v671
    %v680 = vunpack.c.l.b16 %v672
    %v681 = vunpack.c.l.b16 %v673
    %v682 = vpack.c.b16 %v679, %v678
    %v683 = vpack.c.b16 %v681, %v680
    %v687 = vsel %vm86, %v663, 0
    %689 = vmatprep.subr.bf16.mxu0 0
    %690 = vmatpush1.bf16.msra.mxu0 %v682
    %691 = vmatprep.subr.bf16.mxu0 0
    %692 = vmatpush1.bf16.msra.mxu0 %v683
    %693 = vmatprep.subr.bf16.mxu0 0
    %694 = vmatpush1.bf16.msra.mxu0 0
    %695 = vmatprep.subr.bf16.mxu0 0
    %696 = vmatpush1.bf16.msra.mxu0 0
    %697 = vmatprep.subr.bf16.mxu0 0
    %698 = vmatpush1.bf16.msra.mxu0 0
    %699 = vmatprep.subr.bf16.mxu0 0
    %700 = vmatpush1.bf16.msra.mxu0 0
    %701 = vmatprep.subr.bf16.mxu0 0
    %702 = vmatpush1.bf16.msra.mxu0 0
    %703 = vmatprep.subr.bf16.mxu0 0
    %704 = vmatpush1.bf16.msra.mxu0 0
    %705 = vmatprep.subr.bf16.mxu0 0
    %706 = vmatpush1.bf16.msra.mxu0 0
    %707 = vmatprep.subr.bf16.mxu0 0
    %708 = vmatpush1.bf16.msra.mxu0 0
    %709 = vmatprep.subr.bf16.mxu0 0
    %710 = vmatpush1.bf16.msra.mxu0 0
    %711 = vmatprep.subr.bf16.mxu0 0
    %712 = vmatpush1.bf16.msra.mxu0 0
    %713 = vmatprep.subr.bf16.mxu0 0
    %714 = vmatpush1.bf16.msra.mxu0 0
    %715 = vmatprep.subr.bf16.mxu0 0
    %716 = vmatpush1.bf16.msra.mxu0 0
    %717 = vmatprep.subr.bf16.mxu0 0
    %718 = vmatpush1.bf16.msra.mxu0 0
    %719 = vmatprep.subr.bf16.mxu0 0
    %720 = vmatpush1.bf16.msra.mxu0 0
    %721 = vmatprep.mubr.bf16.mxu0 0
    %722 = vmatmul.mubr.bf16.gmra.mrb[0].mxu0 %v687
    %v723 = vpop.f32.mrb[0].mxu0
    %v724 = vadd.f32 0.0, %v723
    %v725 = vpop.f32.mrb[0].mxu0
    %v726 = vpop.f32.mrb[0].mxu0
    %v727 = vadd.f32 0.0, %v726
    %v728 = vpop.f32.mrb[0].mxu0
    %729 = vdwg.mxu0
    %v730 = vadd.f32 %v668, %v724
    %v731 = vadd.f32 %v669, %v727
    %v732 = vxor.u32 %v730, 2147483648
    %v733 = vxor.u32 %v731, 2147483648
    %v734 = vmul.f32 %v732, 1.442695
    %v735 = vpow.pop %v734
    %v736 = vmul.f32 %v733, 1.442695
    %v737 = vpow.pop %v736
    %v738 = vadd.f32 %v735, 1.0
    %v739 = vadd.f32 %v737, 1.0
    %v740 = vrcp.pop %v738
    %v741 = vmul.f32 1.0, %v740
    %v742 = vrcp.pop %v739
    %v743 = vmul.f32 1.0, %v742
    %v744 = vtanh.pop %v730
    %v745 = vtanh.pop %v731
    %v746 = vmul.f32 %v741, %v646
    %v747 = vmul.f32 %v743, %v647
    %750 = vrot.lane.b32.xlu0 %v744, 32
    %v751 = vpop.permute.xlu0 %750
    %752 = vrot.lane.b32.xlu0 %v745, 32
    %v753 = vpop.permute.xlu0 %752
    %v756 = vmul.f32 %v741, %v751
    %v757 = vmul.f32 %v743, %v753
    %760 = vrot.lane.b32.xlu0 %v756, 32
    %v761 = vpop.permute.xlu0 %760
    %762 = vrot.lane.b32.xlu0 %v757, 32
    %v763 = vpop.permute.xlu0 %762
    %v766 = vadd.f32 %v746, %v761
    %v767 = vadd.f32 %v747, %v763
    %v768 = vtanh.pop %v766
    %v769 = vtanh.pop %v767
    %772 = vrot.lane.b32.xlu0 %v768, 32
    %v773 = vpop.permute.xlu0 %772
    %774 = vrot.lane.b32.xlu0 %v769, 32
    %v775 = vpop.permute.xlu0 %774
    %v778 = vmul.f32 %v741, %v773
    %v779 = vmul.f32 %v743, %v775
    %v780 = vpack.c.bf16 %v779, %v778
    %782 = vrot.lane.b32.xlu0 %v780, 64
    %v783 = vpop.permute.xlu0 %782
    %s785 = scalar_lea.vmem [#allocation3], 40
    %786 = vst.msk [vmem:[%s785] sm:$0xff] %vm86, %v783
    %s787 = scalar_lea.vmem [#allocation4], 96
    %v788 = vld [vmem:[%s787] sm:$0xff]
    %v789 = vld [vmem:[%s787 + $0x8] sm:$0xff]
    %v790 = vld [vmem:[%s1] sm:$0xf]
    %v791 = vld [vmem:[%s1 + $0x4] sm:$0xf]
    %v792 = vld [vmem:[%s1 + $0x8] sm:$0xf]
    %v793 = vld [vmem:[%s1 + $0xc] sm:$0xf]
    %v798 = vunpack.c.l.b16 %v790
    %v799 = vunpack.c.l.b16 %v791
    %v800 = vunpack.c.l.b16 %v792
    %v801 = vunpack.c.l.b16 %v793
    %v802 = vpack.c.b16 %v799, %v798
    %v803 = vpack.c.b16 %v801, %v800
    %v807 = vsel %vm86, %v783, 0
    %809 = vmatprep.subr.bf16.mxu0 0
    %810 = vmatpush1.bf16.msra.mxu0 %v802
    %811 = vmatprep.subr.bf16.mxu0 0
    %812 = vmatpush1.bf16.msra.mxu0 %v803
    %813 = vmatprep.subr.bf16.mxu0 0
    %814 = vmatpush1.bf16.msra.mxu0 0
    %815 = vmatprep.subr.bf16.mxu0 0
    %816 = vmatpush1.bf16.msra.mxu0 0
    %817 = vmatprep.subr.bf16.mxu0 0
    %818 = vmatpush1.bf16.msra.mxu0 0
    %819 = vmatprep.subr.bf16.mxu0 0
    %820 = vmatpush1.bf16.msra.mxu0 0
    %821 = vmatprep.subr.bf16.mxu0 0
    %822 = vmatpush1.bf16.msra.mxu0 0
    %823 = vmatprep.subr.bf16.mxu0 0
    %824 = vmatpush1.bf16.msra.mxu0 0
    %825 = vmatprep.subr.bf16.mxu0 0
    %826 = vmatpush1.bf16.msra.mxu0 0
    %827 = vmatprep.subr.bf16.mxu0 0
    %828 = vmatpush1.bf16.msra.mxu0 0
    %829 = vmatprep.subr.bf16.mxu0 0
    %830 = vmatpush1.bf16.msra.mxu0 0
    %831 = vmatprep.subr.bf16.mxu0 0
    %832 = vmatpush1.bf16.msra.mxu0 0
    %833 = vmatprep.subr.bf16.mxu0 0
    %834 = vmatpush1.bf16.msra.mxu0 0
    %835 = vmatprep.subr.bf16.mxu0 0
    %836 = vmatpush1.bf16.msra.mxu0 0
    %837 = vmatprep.subr.bf16.mxu0 0
    %838 = vmatpush1.bf16.msra.mxu0 0
    %839 = vmatprep.subr.bf16.mxu0 0
    %840 = vmatpush1.bf16.msra.mxu0 0
    %841 = vmatprep.mubr.bf16.mxu0 0
    %842 = vmatmul.mubr.bf16.gmra.mrb[0].mxu0 %v807
    %v843 = vpop.f32.mrb[0].mxu0
    %v844 = vadd.f32 0.0, %v843
    %v845 = vpop.f32.mrb[0].mxu0
    %v846 = vpop.f32.mrb[0].mxu0
    %v847 = vadd.f32 0.0, %v846
    %v848 = vpop.f32.mrb[0].mxu0
    %849 = vdwg.mxu0
    %v850 = vadd.f32 %v788, %v844
    %v851 = vadd.f32 %v789, %v847
    %v852 = vxor.u32 %v850, 2147483648
    %v853 = vxor.u32 %v851, 2147483648
    %v854 = vmul.f32 %v852, 1.442695
    %v855 = vpow.pop %v854
    %v856 = vmul.f32 %v853, 1.442695
    %v857 = vpow.pop %v856
    %v858 = vadd.f32 %v855, 1.0
    %v859 = vadd.f32 %v857, 1.0
    %v860 = vrcp.pop %v858
    %v861 = vmul.f32 1.0, %v860
    %v862 = vrcp.pop %v859
    %v863 = vmul.f32 1.0, %v862
    %v864 = vtanh.pop %v850
    %v865 = vtanh.pop %v851
    %v866 = vmul.f32 %v861, %v766
    %v867 = vmul.f32 %v863, %v767
    %870 = vrot.lane.b32.xlu0 %v864, 32
    %v871 = vpop.permute.xlu0 %870
    %872 = vrot.lane.b32.xlu0 %v865, 32
    %v873 = vpop.permute.xlu0 %872
    %v876 = vmul.f32 %v861, %v871
    %v877 = vmul.f32 %v863, %v873
    %880 = vrot.lane.b32.xlu0 %v876, 32
    %v881 = vpop.permute.xlu0 %880
    %882 = vrot.lane.b32.xlu0 %v877, 32
    %v883 = vpop.permute.xlu0 %882
    %v886 = vadd.f32 %v866, %v881
    %v887 = vadd.f32 %v867, %v883
    %v888 = vtanh.pop %v886
    %v889 = vtanh.pop %v887
    %892 = vrot.lane.b32.xlu0 %v888, 32
    %v893 = vpop.permute.xlu0 %892
    %894 = vrot.lane.b32.xlu0 %v889, 32
    %v895 = vpop.permute.xlu0 %894
    %v898 = vmul.f32 %v861, %v893
    %v899 = vmul.f32 %v863, %v895
    %v900 = vpack.c.bf16 %v899, %v898
    %902 = vrot.lane.b32.xlu0 %v900, 64
    %v903 = vpop.permute.xlu0 %902
    %s905 = scalar_lea.vmem [#allocation3], 48
    %906 = vst.msk [vmem:[%s905] sm:$0xff] %vm86, %v903
    %s907 = scalar_lea.vmem [#allocation4], 112
    %v908 = vld [vmem:[%s907] sm:$0xff]
    %v909 = vld [vmem:[%s907 + $0x8] sm:$0xff]
    %v910 = vld [vmem:[%s1] sm:$0xf]
    %v911 = vld [vmem:[%s1 + $0x4] sm:$0xf]
    %v912 = vld [vmem:[%s1 + $0x8] sm:$0xf]
    %v913 = vld [vmem:[%s1 + $0xc] sm:$0xf]
    %v918 = vunpack.c.l.b16 %v910
    %v919 = vunpack.c.l.b16 %v911
    %v920 = vunpack.c.l.b16 %v912
    %v921 = vunpack.c.l.b16 %v913
    %v922 = vpack.c.b16 %v919, %v918
    %v923 = vpack.c.b16 %v921, %v920
    %v927 = vsel %vm86, %v903, 0
    %929 = vmatprep.subr.bf16.mxu0 0
    %930 = vmatpush1.bf16.msra.mxu0 %v922
    %931 = vmatprep.subr.bf16.mxu0 0
    %932 = vmatpush1.bf16.msra.mxu0 %v923
    %933 = vmatprep.subr.bf16.mxu0 0
    %934 = vmatpush1.bf16.msra.mxu0 0
    %935 = vmatprep.subr.bf16.mxu0 0
    %936 = vmatpush1.bf16.msra.mxu0 0
    %937 = vmatprep.subr.bf16.mxu0 0
    %938 = vmatpush1.bf16.msra.mxu0 0
    %939 = vmatprep.subr.bf16.mxu0 0
    %940 = vmatpush1.bf16.msra.mxu0 0
    %941 = vmatprep.subr.bf16.mxu0 0
    %942 = vmatpush1.bf16.msra.mxu0 0
    %943 = vmatprep.subr.bf16.mxu0 0
    %944 = vmatpush1.bf16.msra.mxu0 0
    %945 = vmatprep.subr.bf16.mxu0 0
    %946 = vmatpush1.bf16.msra.mxu0 0
    %947 = vmatprep.subr.bf16.mxu0 0
    %948 = vmatpush1.bf16.msra.mxu0 0
    %949 = vmatprep.subr.bf16.mxu0 0
    %950 = vmatpush1.bf16.msra.mxu0 0
    %951 = vmatprep.subr.bf16.mxu0 0
    %952 = vmatpush1.bf16.msra.mxu0 0
    %953 = vmatprep.subr.bf16.mxu0 0
    %954 = vmatpush1.bf16.msra.mxu0 0
    %955 = vmatprep.subr.bf16.mxu0 0
    %956 = vmatpush1.bf16.msra.mxu0 0
    %957 = vmatprep.subr.bf16.mxu0 0
    %958 = vmatpush1.bf16.msra.mxu0 0
    %959 = vmatprep.subr.bf16.mxu0 0
    %960 = vmatpush1.bf16.msra.mxu0 0
    %961 = vmatprep.mubr.bf16.mxu0 0
    %962 = vmatmul.mubr.bf16.gmra.mrb[0].mxu0 %v927
    %v963 = vpop.f32.mrb[0].mxu0
    %v964 = vadd.f32 0.0, %v963
    %v965 = vpop.f32.mrb[0].mxu0
    %v966 = vpop.f32.mrb[0].mxu0
    %v967 = vadd.f32 0.0, %v966
    %v968 = vpop.f32.mrb[0].mxu0
    %969 = vdwg.mxu0
    %v970 = vadd.f32 %v908, %v964
    %v971 = vadd.f32 %v909, %v967
    %v972 = vxor.u32 %v970, 2147483648
    %v973 = vxor.u32 %v971, 2147483648
    %v974 = vmul.f32 %v972, 1.442695
    %v975 = vpow.pop %v974
    %v976 = vmul.f32 %v973, 1.442695
    %v977 = vpow.pop %v976
    %v978 = vadd.f32 %v975, 1.0
    %v979 = vadd.f32 %v977, 1.0
    %v980 = vrcp.pop %v978
    %v981 = vmul.f32 1.0, %v980
    %v982 = vrcp.pop %v979
    %v983 = vmul.f32 1.0, %v982
    %v984 = vtanh.pop %v970
    %v985 = vtanh.pop %v971
    %v986 = vmul.f32 %v981, %v886
    %v987 = vmul.f32 %v983, %v887
    %990 = vrot.lane.b32.xlu0 %v984, 32
    %v991 = vpop.permute.xlu0 %990
    %992 = vrot.lane.b32.xlu0 %v985, 32
    %v993 = vpop.permute.xlu0 %992
    %v996 = vmul.f32 %v981, %v991
    %v997 = vmul.f32 %v983, %v993
    %1000 = vrot.lane.b32.xlu0 %v996, 32
    %v1001 = vpop.permute.xlu0 %1000
    %1002 = vrot.lane.b32.xlu0 %v997, 32
    %v1003 = vpop.permute.xlu0 %1002
    %v1006 = vadd.f32 %v986, %v1001
    %v1007 = vadd.f32 %v987, %v1003
    %v1008 = vtanh.pop %v1006
    %v1009 = vtanh.pop %v1007
    %1012 = vrot.lane.b32.xlu0 %v1008, 32
    %v1013 = vpop.permute.xlu0 %1012
    %1014 = vrot.lane.b32.xlu0 %v1009, 32
    %v1015 = vpop.permute.xlu0 %1014
    %v1018 = vmul.f32 %v981, %v1013
    %v1019 = vmul.f32 %v983, %v1015
    %v1020 = vpack.c.bf16 %v1019, %v1018
    %1022 = vrot.lane.b32.xlu0 %v1020, 64
    %v1023 = vpop.permute.xlu0 %1022
    %s1025 = scalar_lea.vmem [#allocation3], 56
    %1026 = vst.msk [vmem:[%s1025] sm:$0xff] %vm86, %v1023
    %v1027 = vld [vmem:[#allocation3] sm:$0xff]
    %v1028 = vld [vmem:[#allocation3 + $0x8] sm:$0xff]
    %v1029 = vld [vmem:[#allocation3 + $0x10] sm:$0xff]
    %v1030 = vld [vmem:[#allocation3 + $0x18] sm:$0xff]
    %v1031 = vld [vmem:[#allocation3 + $0x20] sm:$0xff]
    %v1032 = vld [vmem:[#allocation3 + $0x28] sm:$0xff]
    %v1033 = vld [vmem:[#allocation3 + $0x30] sm:$0xff]
    %v1034 = vld [vmem:[#allocation3 + $0x38] sm:$0xff]
    %v1035 = vld [vmem:[#allocation6] sm:$0xf]
    %v1036 = vld [vmem:[#allocation6 + $0x4] sm:$0xf]
    %v1037 = vld [vmem:[#allocation6 + $0x8] sm:$0xf]
    %v1038 = vld [vmem:[#allocation6 + $0xc] sm:$0xf]
    %v1039 = vld [vmem:[%s4] sm:$0x1]
    %v1041 = vlaneseq
    %v1042 = vshrl.u32 %v1041, 7
    %v1043 = vsub.s32 0, %v1042
    %v1044 = vrot.slane %v1039, %v1043
    %v1050 = vunpack.c.l.b16 %v1035
    %v1051 = vunpack.c.l.b16 %v1036
    %v1052 = vunpack.c.l.b16 %v1037
    %v1053 = vunpack.c.l.b16 %v1038
    %v1054 = vpack.c.b16 %v1051, %v1050
    %v1055 = vpack.c.b16 %v1053, %v1052
    %v1059 = vsel %vm86, %v1027, 0
    %v1062 = vsel %vm86, %v1028, 0
    %v1065 = vsel %vm86, %v1029, 0
    %v1068 = vsel %vm86, %v1030, 0
    %v1071 = vsel %vm86, %v1031, 0
    %v1074 = vsel %vm86, %v1032, 0
    %v1077 = vsel %vm86, %v1033, 0
    %v1080 = vsel %vm86, %v1034, 0
    %1082 = vmatprep.subr.bf16.mxu0 0
    %1083 = vmatpush1.bf16.msra.mxu0 %v1054
    %1084 = vmatprep.subr.bf16.mxu0 0
    %1085 = vmatpush1.bf16.msra.mxu0 %v1055
    %1086 = vmatprep.subr.bf16.mxu0 0
    %1087 = vmatpush1.bf16.msra.mxu0 0
    %1088 = vmatprep.subr.bf16.mxu0 0
    %1089 = vmatpush1.bf16.msra.mxu0 0
    %1090 = vmatprep.subr.bf16.mxu0 0
    %1091 = vmatpush1.bf16.msra.mxu0 0
    %1092 = vmatprep.subr.bf16.mxu0 0
    %1093 = vmatpush1.bf16.msra.mxu0 0
    %1094 = vmatprep.subr.bf16.mxu0 0
    %1095 = vmatpush1.bf16.msra.mxu0 0
    %1096 = vmatprep.subr.bf16.mxu0 0
    %1097 = vmatpush1.bf16.msra.mxu0 0
    %1098 = vmatprep.subr.bf16.mxu0 0
    %1099 = vmatpush1.bf16.msra.mxu0 0
    %1100 = vmatprep.subr.bf16.mxu0 0
    %1101 = vmatpush1.bf16.msra.mxu0 0
    %1102 = vmatprep.subr.bf16.mxu0 0
    %1103 = vmatpush1.bf16.msra.mxu0 0
    %1104 = vmatprep.subr.bf16.mxu0 0
    %1105 = vmatpush1.bf16.msra.mxu0 0
    %1106 = vmatprep.subr.bf16.mxu0 0
    %1107 = vmatpush1.bf16.msra.mxu0 0
    %1108 = vmatprep.subr.bf16.mxu0 0
    %1109 = vmatpush1.bf16.msra.mxu0 0
    %1110 = vmatprep.subr.bf16.mxu0 0
    %1111 = vmatpush1.bf16.msra.mxu0 0
    %1112 = vmatprep.subr.bf16.mxu0 0
    %1113 = vmatpush1.bf16.msra.mxu0 0
    %1114 = vmatprep.mubr.bf16.mxu0 0
    %1115 = vmatmul.mubr.bf16.gmra.mrb[0].mxu0 %v1059
    %v1116 = vpop.f32.mrb[0].mxu0
    %v1117 = vadd.f32 %v1044, %v1116
    %v1118 = vpop.f32.mrb[0].mxu0
    %v1119 = vpop.f32.mrb[0].mxu0
    %v1120 = vadd.f32 %v1044, %v1119
    %v1121 = vpop.f32.mrb[0].mxu0
    %1122 = vmatprep.mubr.bf16.mxu0 0
    %1123 = vmatmul.mubr.bf16.gmra.mrb[0].mxu0 %v1062
    %v1124 = vpop.f32.mrb[0].mxu0
    %v1125 = vadd.f32 %v1044, %v1124
    %v1126 = vpop.f32.mrb[0].mxu0
    %v1127 = vpop.f32.mrb[0].mxu0
    %v1128 = vadd.f32 %v1044, %v1127
    %v1129 = vpop.f32.mrb[0].mxu0
    %1130 = vmatprep.mubr.bf16.mxu0 0
    %1131 = vmatmul.mubr.bf16.gmra.mrb[0].mxu0 %v1065
    %v1132 = vpop.f32.mrb[0].mxu0
    %v1133 = vadd.f32 %v1044, %v1132
    %v1134 = vpop.f32.mrb[0].mxu0
    %v1135 = vpop.f32.mrb[0].mxu0
    %v1136 = vadd.f32 %v1044, %v1135
    %v1137 = vpop.f32.mrb[0].mxu0
    %1138 = vmatprep.mubr.bf16.mxu0 0
    %1139 = vmatmul.mubr.bf16.gmra.mrb[0].mxu0 %v1068
    %v1140 = vpop.f32.mrb[0].mxu0
    %v1141 = vadd.f32 %v1044, %v1140
    %v1142 = vpop.f32.mrb[0].mxu0
    %v1143 = vpop.f32.mrb[0].mxu0
    %v1144 = vadd.f32 %v1044, %v1143
    %v1145 = vpop.f32.mrb[0].mxu0
    %1146 = vmatprep.mubr.bf16.mxu0 0
    %1147 = vmatmul.mubr.bf16.gmra.mrb[0].mxu0 %v1071
    %v1148 = vpop.f32.mrb[0].mxu0
    %v1149 = vadd.f32 %v1044, %v1148
    %v1150 = vpop.f32.mrb[0].mxu0
    %v1151 = vpop.f32.mrb[0].mxu0
    %v1152 = vadd.f32 %v1044, %v1151
    %v1153 = vpop.f32.mrb[0].mxu0
    %1154 = vmatprep.mubr.bf16.mxu0 0
    %1155 = vmatmul.mubr.bf16.gmra.mrb[0].mxu0 %v1074
    %v1156 = vpop.f32.mrb[0].mxu0
    %v1157 = vadd.f32 %v1044, %v1156
    %v1158 = vpop.f32.mrb[0].mxu0
    %v1159 = vpop.f32.mrb[0].mxu0
    %v1160 = vadd.f32 %v1044, %v1159
    %v1161 = vpop.f32.mrb[0].mxu0
    %1162 = vmatprep.mubr.bf16.mxu0 0
    %1163 = vmatmul.mubr.bf16.gmra.mrb[0].mxu0 %v1077
    %v1164 = vpop.f32.mrb[0].mxu0
    %v1165 = vadd.f32 %v1044, %v1164
    %v1166 = vpop.f32.mrb[0].mxu0
    %v1167 = vpop.f32.mrb[0].mxu0
    %v1168 = vadd.f32 %v1044, %v1167
    %v1169 = vpop.f32.mrb[0].mxu0
    %1170 = vmatprep.mubr.bf16.mxu0 0
    %1171 = vmatmul.mubr.bf16.gmra.mrb[0].mxu0 %v1080
    %v1172 = vpop.f32.mrb[0].mxu0
    %v1173 = vadd.f32 %v1044, %v1172
    %v1174 = vpop.f32.mrb[0].mxu0
    %v1175 = vpop.f32.mrb[0].mxu0
    %v1176 = vadd.f32 %v1044, %v1175
    %v1177 = vpop.f32.mrb[0].mxu0
    %1178 = vdwg.mxu0
    %1179 = vst [vmem:[#allocation2] sm:$0xff] %v1117
    %1180 = vst [vmem:[#allocation2 + $0x8] sm:$0xff] %v1120
    %1181 = vst [vmem:[#allocation2 + $0x10] sm:$0xff] %v1125
    %1182 = vst [vmem:[#allocation2 + $0x18] sm:$0xff] %v1128
    %1183 = vst [vmem:[#allocation2 + $0x20] sm:$0xff] %v1133
    %1184 = vst [vmem:[#allocation2 + $0x28] sm:$0xff] %v1136
    %1185 = vst [vmem:[#allocation2 + $0x30] sm:$0xff] %v1141
    %1186 = vst [vmem:[#allocation2 + $0x38] sm:$0xff] %v1144
    %1187 = vst [vmem:[#allocation2 + $0x40] sm:$0xff] %v1149
    %1188 = vst [vmem:[#allocation2 + $0x48] sm:$0xff] %v1152
    %1189 = vst [vmem:[#allocation2 + $0x50] sm:$0xff] %v1157
    %1190 = vst [vmem:[#allocation2 + $0x58] sm:$0xff] %v1160
    %1191 = vst [vmem:[#allocation2 + $0x60] sm:$0xff] %v1165
    %1192 = vst [vmem:[#allocation2 + $0x68] sm:$0xff] %v1168
    %1193 = vst [vmem:[#allocation2 + $0x70] sm:$0xff] %v1173
    %1194 = vst [vmem:[#allocation2 + $0x78] sm:$0xff] %v1176
    %v1195 = vld [vmem:[#allocation2] sm:$0xff]
    %v1196 = vld [vmem:[#allocation2 + $0x8] sm:$0xff]
    %v1197 = vld [vmem:[#allocation8] sm:$0xf]
    %v1198 = vld [vmem:[#allocation8 + $0x4] sm:$0xf]
    %v1199 = vld [vmem:[#allocation8 + $0x8] sm:$0xf]
    %v1200 = vld [vmem:[#allocation8 + $0xc] sm:$0xf]
    %v1205 = vunpack.c.l.b16 %v1197
    %v1206 = vunpack.c.l.b16 %v1198
    %v1207 = vunpack.c.l.b16 %v1199
    %v1208 = vunpack.c.l.b16 %v1200
    %v1209 = vpack.c.b16 %v1206, %v1205
    %v1210 = vpack.c.b16 %v1208, %v1207
    %1213 = vmatprep.subr.bf16.mxu0 0
    %1214 = vmatpush1.bf16.msra.mxu0 %v1209
    %1215 = vmatprep.subr.bf16.mxu0 0
    %1216 = vmatpush1.bf16.msra.mxu0 %v1210
    %1217 = vmatprep.subr.bf16.mxu0 0
    %1218 = vmatpush1.bf16.msra.mxu0 0
    %1219 = vmatprep.subr.bf16.mxu0 0
    %1220 = vmatpush1.bf16.msra.mxu0 0
    %1221 = vmatprep.subr.bf16.mxu0 0
    %1222 = vmatpush1.bf16.msra.mxu0 0
    %1223 = vmatprep.subr.bf16.mxu0 0
    %1224 = vmatpush1.bf16.msra.mxu0 0
    %1225 = vmatprep.subr.bf16.mxu0 0
    %1226 = vmatpush1.bf16.msra.mxu0 0
    %1227 = vmatprep.subr.bf16.mxu0 0
    %1228 = vmatpush1.bf16.msra.mxu0 0
    %1229 = vmatprep.subr.bf16.mxu0 0
    %1230 = vmatpush1.bf16.msra.mxu0 0
    %1231 = vmatprep.subr.bf16.mxu0 0
    %1232 = vmatpush1.bf16.msra.mxu0 0
    %1233 = vmatprep.subr.bf16.mxu0 0
    %1234 = vmatpush1.bf16.msra.mxu0 0
    %1235 = vmatprep.subr.bf16.mxu0 0
    %1236 = vmatpush1.bf16.msra.mxu0 0
    %1237 = vmatprep.subr.bf16.mxu0 0
    %1238 = vmatpush1.bf16.msra.mxu0 0
    %1239 = vmatprep.subr.bf16.mxu0 0
    %1240 = vmatpush1.bf16.msra.mxu0 0
    %1241 = vmatprep.subr.bf16.mxu0 0
    %1242 = vmatpush1.bf16.msra.mxu0 0
    %1243 = vmatprep.subr.bf16.mxu0 0
    %1244 = vmatpush1.bf16.msra.mxu0 0
    %1245 = vmatprep.mubr.bf16.mxu0 0
    %1246 = vmatmul.mubr.bf16.gmra.mrb[0].mxu0 %v88
    %v1247 = vpop.f32.mrb[0].mxu0
    %v1248 = vadd.f32 0.0, %v1247
    %v1249 = vpop.f32.mrb[0].mxu0
    %v1250 = vpop.f32.mrb[0].mxu0
    %v1251 = vadd.f32 0.0, %v1250
    %v1252 = vpop.f32.mrb[0].mxu0
    %1253 = vdwg.mxu0
    %v1254 = vadd.f32 %v1195, %v1248
    %v1255 = vadd.f32 %v1196, %v1251
    %v1256 = vxor.u32 %v1254, 2147483648
    %v1257 = vxor.u32 %v1255, 2147483648
    %v1258 = vmul.f32 %v1256, 1.442695
    %v1259 = vpow.pop %v1258
    %v1260 = vmul.f32 %v1257, 1.442695
    %v1261 = vpow.pop %v1260
    %v1262 = vadd.f32 %v1259, 1.0
    %v1263 = vadd.f32 %v1261, 1.0
    %v1264 = vrcp.pop %v1262
    %v1265 = vmul.f32 1.0, %v1264
    %v1266 = vrcp.pop %v1263
    %v1267 = vmul.f32 1.0, %v1266
    %v1268 = vtanh.pop %v1254
    %v1269 = vtanh.pop %v1255
    %v1270 = vmul.f32 %v1265, 0.0
    %v1271 = vmul.f32 %v1267, 0.0
    %1274 = vrot.lane.b32.xlu0 %v1268, 32
    %v1275 = vpop.permute.xlu0 %1274
    %1276 = vrot.lane.b32.xlu0 %v1269, 32
    %v1277 = vpop.permute.xlu0 %1276
    %v1280 = vmul.f32 %v1265, %v1275
    %v1281 = vmul.f32 %v1267, %v1277
    %1284 = vrot.lane.b32.xlu0 %v1280, 32
    %v1285 = vpop.permute.xlu0 %1284
    %1286 = vrot.lane.b32.xlu0 %v1281, 32
    %v1287 = vpop.permute.xlu0 %1286
    %v1290 = vadd.f32 %v1270, %v1285
    %v1291 = vadd.f32 %v1271, %v1287
    %v1292 = vtanh.pop %v1290
    %v1293 = vtanh.pop %v1291
    %1296 = vrot.lane.b32.xlu0 %v1292, 32
    %v1297 = vpop.permute.xlu0 %1296
    %1298 = vrot.lane.b32.xlu0 %v1293, 32
    %v1299 = vpop.permute.xlu0 %1298
    %v1302 = vmul.f32 %v1265, %v1297
    %v1303 = vmul.f32 %v1267, %v1299
    %s1304 = scalar_lea.vmem [#allocation2], 16
    %v1305 = vld [vmem:[%s1304] sm:$0xff]
    %v1306 = vld [vmem:[%s1304 + $0x8] sm:$0xff]
    %v1307 = vpack.c.bf16 %v1303, %v1302
    %1309 = vrot.lane.b32.xlu0 %v1307, 64
    %v1310 = vpop.permute.xlu0 %1309
    %v1312 = vsel %vm86, %v1310, 0
    %1314 = vmatprep.subr.bf16.mxu0 0
    %1315 = vmatpush1.bf16.msra.mxu0 %v1209
    %1316 = vmatprep.subr.bf16.mxu0 0
    %1317 = vmatpush1.bf16.msra.mxu0 %v1210
    %1318 = vmatprep.subr.bf16.mxu0 0
    %1319 = vmatpush1.bf16.msra.mxu0 0
    %1320 = vmatprep.subr.bf16.mxu0 0
    %1321 = vmatpush1.bf16.msra.mxu0 0
    %1322 = vmatprep.subr.bf16.mxu0 0
    %1323 = vmatpush1.bf16.msra.mxu0 0
    %1324 = vmatprep.subr.bf16.mxu0 0
    %1325 = vmatpush1.bf16.msra.mxu0 0
    %1326 = vmatprep.subr.bf16.mxu0 0
    %1327 = vmatpush1.bf16.msra.mxu0 0
    %1328 = vmatprep.subr.bf16.mxu0 0
    %1329 = vmatpush1.bf16.msra.mxu0 0
    %1330 = vmatprep.subr.bf16.mxu0 0
    %1331 = vmatpush1.bf16.msra.mxu0 0
    %1332 = vmatprep.subr.bf16.mxu0 0
    %1333 = vmatpush1.bf16.msra.mxu0 0
    %1334 = vmatprep.subr.bf16.mxu0 0
    %1335 = vmatpush1.bf16.msra.mxu0 0
    %1336 = vmatprep.subr.bf16.mxu0 0
    %1337 = vmatpush1.bf16.msra.mxu0 0
    %1338 = vmatprep.subr.bf16.mxu0 0
    %1339 = vmatpush1.bf16.msra.mxu0 0
    %1340 = vmatprep.subr.bf16.mxu0 0
    %1341 = vmatpush1.bf16.msra.mxu0 0
    %1342 = vmatprep.subr.bf16.mxu0 0
    %1343 = vmatpush1.bf16.msra.mxu0 0
    %1344 = vmatprep.subr.bf16.mxu0 0
    %1345 = vmatpush1.bf16.msra.mxu0 0
    %1346 = vmatprep.mubr.bf16.mxu0 0
    %1347 = vmatmul.mubr.bf16.gmra.mrb[0].mxu0 %v1312
    %v1348 = vpop.f32.mrb[0].mxu0
    %v1349 = vadd.f32 0.0, %v1348
    %v1350 = vpop.f32.mrb[0].mxu0
    %v1351 = vpop.f32.mrb[0].mxu0
    %v1352 = vadd.f32 0.0, %v1351
    %v1353 = vpop.f32.mrb[0].mxu0
    %1354 = vdwg.mxu0
    %v1355 = vadd.f32 %v1305, %v1349
    %v1356 = vadd.f32 %v1306, %v1352
    %v1357 = vxor.u32 %v1355, 2147483648
    %v1358 = vxor.u32 %v1356, 2147483648
    %v1359 = vmul.f32 %v1357, 1.442695
    %v1360 = vpow.pop %v1359
    %v1361 = vmul.f32 %v1358, 1.442695
    %v1362 = vpow.pop %v1361
    %v1363 = vadd.f32 %v1360, 1.0
    %v1364 = vadd.f32 %v1362, 1.0
    %v1365 = vrcp.pop %v1363
    %v1366 = vmul.f32 1.0, %v1365
    %v1367 = vrcp.pop %v1364
    %v1368 = vmul.f32 1.0, %v1367
    %v1369 = vtanh.pop %v1355
    %v1370 = vtanh.pop %v1356
    %v1371 = vmul.f32 %v1366, %v1290
    %v1372 = vmul.f32 %v1368, %v1291
    %1375 = vrot.lane.b32.xlu0 %v1369, 32
    %v1376 = vpop.permute.xlu0 %1375
    %1377 = vrot.lane.b32.xlu0 %v1370, 32
    %v1378 = vpop.permute.xlu0 %1377
    %v1381 = vmul.f32 %v1366, %v1376
    %v1382 = vmul.f32 %v1368, %v1378
    %1385 = vrot.lane.b32.xlu0 %v1381, 32
    %v1386 = vpop.permute.xlu0 %1385
    %1387 = vrot.lane.b32.xlu0 %v1382, 32
    %v1388 = vpop.permute.xlu0 %1387
    %v1391 = vadd.f32 %v1371, %v1386
    %v1392 = vadd.f32 %v1372, %v1388
    %v1393 = vtanh.pop %v1391
    %v1394 = vtanh.pop %v1392
    %1397 = vrot.lane.b32.xlu0 %v1393, 32
    %v1398 = vpop.permute.xlu0 %1397
    %1399 = vrot.lane.b32.xlu0 %v1394, 32
    %v1400 = vpop.permute.xlu0 %1399
    %v1403 = vmul.f32 %v1366, %v1398
    %v1404 = vmul.f32 %v1368, %v1400
    %s1405 = scalar_lea.vmem [#allocation2], 32
    %v1406 = vld [vmem:[%s1405] sm:$0xff]
    %v1407 = vld [vmem:[%s1405 + $0x8] sm:$0xff]
    %v1408 = vpack.c.bf16 %v1404, %v1403
    %1410 = vrot.lane.b32.xlu0 %v1408, 64
    %v1411 = vpop.permute.xlu0 %1410
    %v1413 = vsel %vm86, %v1411, 0
    %1415 = vmatprep.subr.bf16.mxu0 0
    %1416 = vmatpush1.bf16.msra.mxu0 %v1209
    %1417 = vmatprep.subr.bf16.mxu0 0
    %1418 = vmatpush1.bf16.msra.mxu0 %v1210
    %1419 = vmatprep.subr.bf16.mxu0 0
    %1420 = vmatpush1.bf16.msra.mxu0 0
    %1421 = vmatprep.subr.bf16.mxu0 0
    %1422 = vmatpush1.bf16.msra.mxu0 0
    %1423 = vmatprep.subr.bf16.mxu0 0
    %1424 = vmatpush1.bf16.msra.mxu0 0
    %1425 = vmatprep.subr.bf16.mxu0 0
    %1426 = vmatpush1.bf16.msra.mxu0 0
    %1427 = vmatprep.subr.bf16.mxu0 0
    %1428 = vmatpush1.bf16.msra.mxu0 0
    %1429 = vmatprep.subr.bf16.mxu0 0
    %1430 = vmatpush1.bf16.msra.mxu0 0
    %1431 = vmatprep.subr.bf16.mxu0 0
    %1432 = vmatpush1.bf16.msra.mxu0 0
    %1433 = vmatprep.subr.bf16.mxu0 0
    %1434 = vmatpush1.bf16.msra.mxu0 0
    %1435 = vmatprep.subr.bf16.mxu0 0
    %1436 = vmatpush1.bf16.msra.mxu0 0
    %1437 = vmatprep.subr.bf16.mxu0 0
    %1438 = vmatpush1.bf16.msra.mxu0 0
    %1439 = vmatprep.subr.bf16.mxu0 0
    %1440 = vmatpush1.bf16.msra.mxu0 0
    %1441 = vmatprep.subr.bf16.mxu0 0
    %1442 = vmatpush1.bf16.msra.mxu0 0
    %1443 = vmatprep.subr.bf16.mxu0 0
    %1444 = vmatpush1.bf16.msra.mxu0 0
    %1445 = vmatprep.subr.bf16.mxu0 0
    %1446 = vmatpush1.bf16.msra.mxu0 0
    %1447 = vmatprep.mubr.bf16.mxu0 0
    %1448 = vmatmul.mubr.bf16.gmra.mrb[0].mxu0 %v1413
    %v1449 = vpop.f32.mrb[0].mxu0
    %v1450 = vadd.f32 0.0, %v1449
    %v1451 = vpop.f32.mrb[0].mxu0
    %v1452 = vpop.f32.mrb[0].mxu0
    %v1453 = vadd.f32 0.0, %v1452
    %v1454 = vpop.f32.mrb[0].mxu0
    %1455 = vdwg.mxu0
    %v1456 = vadd.f32 %v1406, %v1450
    %v1457 = vadd.f32 %v1407, %v1453
    %v1458 = vxor.u32 %v1456, 2147483648
    %v1459 = vxor.u32 %v1457, 2147483648
    %v1460 = vmul.f32 %v1458, 1.442695
    %v1461 = vpow.pop %v1460
    %v1462 = vmul.f32 %v1459, 1.442695
    %v1463 = vpow.pop %v1462
    %v1464 = vadd.f32 %v1461, 1.0
    %v1465 = vadd.f32 %v1463, 1.0
    %v1466 = vrcp.pop %v1464
    %v1467 = vmul.f32 1.0, %v1466
    %v1468 = vrcp.pop %v1465
    %v1469 = vmul.f32 1.0, %v1468
    %v1470 = vtanh.pop %v1456
    %v1471 = vtanh.pop %v1457
    %v1472 = vmul.f32 %v1467, %v1391
    %v1473 = vmul.f32 %v1469, %v1392
    %1476 = vrot.lane.b32.xlu0 %v1470, 32
    %v1477 = vpop.permute.xlu0 %1476
    %1478 = vrot.lane.b32.xlu0 %v1471, 32
    %v1479 = vpop.permute.xlu0 %1478
    %v1482 = vmul.f32 %v1467, %v1477
    %v1483 = vmul.f32 %v1469, %v1479
    %1486 = vrot.lane.b32.xlu0 %v1482, 32
    %v1487 = vpop.permute.xlu0 %1486
    %1488 = vrot.lane.b32.xlu0 %v1483, 32
    %v1489 = vpop.permute.xlu0 %1488
    %v1492 = vadd.f32 %v1472, %v1487
    %v1493 = vadd.f32 %v1473, %v1489
    %v1494 = vtanh.pop %v1492
    %v1495 = vtanh.pop %v1493
    %1498 = vrot.lane.b32.xlu0 %v1494, 32
    %v1499 = vpop.permute.xlu0 %1498
    %1500 = vrot.lane.b32.xlu0 %v1495, 32
    %v1501 = vpop.permute.xlu0 %1500
    %v1504 = vmul.f32 %v1467, %v1499
    %v1505 = vmul.f32 %v1469, %v1501
    %s1506 = scalar_lea.vmem [#allocation2], 48
    %v1507 = vld [vmem:[%s1506] sm:$0xff]
    %v1508 = vld [vmem:[%s1506 + $0x8] sm:$0xff]
    %v1509 = vpack.c.bf16 %v1505, %v1504
    %1511 = vrot.lane.b32.xlu0 %v1509, 64
    %v1512 = vpop.permute.xlu0 %1511
    %v1514 = vsel %vm86, %v1512, 0
    %1516 = vmatprep.subr.bf16.mxu0 0
    %1517 = vmatpush1.bf16.msra.mxu0 %v1209
    %1518 = vmatprep.subr.bf16.mxu0 0
    %1519 = vmatpush1.bf16.msra.mxu0 %v1210
    %1520 = vmatprep.subr.bf16.mxu0 0
    %1521 = vmatpush1.bf16.msra.mxu0 0
    %1522 = vmatprep.subr.bf16.mxu0 0
    %1523 = vmatpush1.bf16.msra.mxu0 0
    %1524 = vmatprep.subr.bf16.mxu0 0
    %1525 = vmatpush1.bf16.msra.mxu0 0
    %1526 = vmatprep.subr.bf16.mxu0 0
    %1527 = vmatpush1.bf16.msra.mxu0 0
    %1528 = vmatprep.subr.bf16.mxu0 0
    %1529 = vmatpush1.bf16.msra.mxu0 0
    %1530 = vmatprep.subr.bf16.mxu0 0
    %1531 = vmatpush1.bf16.msra.mxu0 0
    %1532 = vmatprep.subr.bf16.mxu0 0
    %1533 = vmatpush1.bf16.msra.mxu0 0
    %1534 = vmatprep.subr.bf16.mxu0 0
    %1535 = vmatpush1.bf16.msra.mxu0 0
    %1536 = vmatprep.subr.bf16.mxu0 0
    %1537 = vmatpush1.bf16.msra.mxu0 0
    %1538 = vmatprep.subr.bf16.mxu0 0
    %1539 = vmatpush1.bf16.msra.mxu0 0
    %1540 = vmatprep.subr.bf16.mxu0 0
    %1541 = vmatpush1.bf16.msra.mxu0 0
    %1542 = vmatprep.subr.bf16.mxu0 0
    %1543 = vmatpush1.bf16.msra.mxu0 0
    %1544 = vmatprep.subr.bf16.mxu0 0
    %1545 = vmatpush1.bf16.msra.mxu0 0
    %1546 = vmatprep.subr.bf16.mxu0 0
    %1547 = vmatpush1.bf16.msra.mxu0 0
    %1548 = vmatprep.mubr.bf16.mxu0 0
    %1549 = vmatmul.mubr.bf16.gmra.mrb[0].mxu0 %v1514
    %v1550 = vpop.f32.mrb[0].mxu0
    %v1551 = vadd.f32 0.0, %v1550
    %v1552 = vpop.f32.mrb[0].mxu0
    %v1553 = vpop.f32.mrb[0].mxu0
    %v1554 = vadd.f32 0.0, %v1553
    %v1555 = vpop.f32.mrb[0].mxu0
    %1556 = vdwg.mxu0
    %v1557 = vadd.f32 %v1507, %v1551
    %v1558 = vadd.f32 %v1508, %v1554
    %v1559 = vxor.u32 %v1557, 2147483648
    %v1560 = vxor.u32 %v1558, 2147483648
    %v1561 = vmul.f32 %v1559, 1.442695
    %v1562 = vpow.pop %v1561
    %v1563 = vmul.f32 %v1560, 1.442695
    %v1564 = vpow.pop %v1563
    %v1565 = vadd.f32 %v1562, 1.0
    %v1566 = vadd.f32 %v1564, 1.0
    %v1567 = vrcp.pop %v1565
    %v1568 = vmul.f32 1.0, %v1567
    %v1569 = vrcp.pop %v1566
    %v1570 = vmul.f32 1.0, %v1569
    %v1571 = vtanh.pop %v1557
    %v1572 = vtanh.pop %v1558
    %v1573 = vmul.f32 %v1568, %v1492
    %v1574 = vmul.f32 %v1570, %v1493
    %1577 = vrot.lane.b32.xlu0 %v1571, 32
    %v1578 = vpop.permute.xlu0 %1577
    %1579 = vrot.lane.b32.xlu0 %v1572, 32
    %v1580 = vpop.permute.xlu0 %1579
    %v1583 = vmul.f32 %v1568, %v1578
    %v1584 = vmul.f32 %v1570, %v1580
    %1587 = vrot.lane.b32.xlu0 %v1583, 32
    %v1588 = vpop.permute.xlu0 %1587
    %1589 = vrot.lane.b32.xlu0 %v1584, 32
    %v1590 = vpop.permute.xlu0 %1589
    %v1593 = vadd.f32 %v1573, %v1588
    %v1594 = vadd.f32 %v1574, %v1590
    %v1595 = vtanh.pop %v1593
    %v1596 = vtanh.pop %v1594
    %1599 = vrot.lane.b32.xlu0 %v1595, 32
    %v1600 = vpop.permute.xlu0 %1599
    %1601 = vrot.lane.b32.xlu0 %v1596, 32
    %v1602 = vpop.permute.xlu0 %1601
    %v1605 = vmul.f32 %v1568, %v1600
    %v1606 = vmul.f32 %v1570, %v1602
    %s1607 = scalar_lea.vmem [#allocation2], 64
    %v1608 = vld [vmem:[%s1607] sm:$0xff]
    %v1609 = vld [vmem:[%s1607 + $0x8] sm:$0xff]
    %v1610 = vpack.c.bf16 %v1606, %v1605
    %1612 = vrot.lane.b32.xlu0 %v1610, 64
    %v1613 = vpop.permute.xlu0 %1612
    %v1615 = vsel %vm86, %v1613, 0
    %1617 = vmatprep.subr.bf16.mxu0 0
    %1618 = vmatpush1.bf16.msra.mxu0 %v1209
    %1619 = vmatprep.subr.bf16.mxu0 0
    %1620 = vmatpush1.bf16.msra.mxu0 %v1210
    %1621 = vmatprep.subr.bf16.mxu0 0
    %1622 = vmatpush1.bf16.msra.mxu0 0
    %1623 = vmatprep.subr.bf16.mxu0 0
    %1624 = vmatpush1.bf16.msra.mxu0 0
    %1625 = vmatprep.subr.bf16.mxu0 0
    %1626 = vmatpush1.bf16.msra.mxu0 0
    %1627 = vmatprep.subr.bf16.mxu0 0
    %1628 = vmatpush1.bf16.msra.mxu0 0
    %1629 = vmatprep.subr.bf16.mxu0 0
    %1630 = vmatpush1.bf16.msra.mxu0 0
    %1631 = vmatprep.subr.bf16.mxu0 0
    %1632 = vmatpush1.bf16.msra.mxu0 0
    %1633 = vmatprep.subr.bf16.mxu0 0
    %1634 = vmatpush1.bf16.msra.mxu0 0
    %1635 = vmatprep.subr.bf16.mxu0 0
    %1636 = vmatpush1.bf16.msra.mxu0 0
    %1637 = vmatprep.subr.bf16.mxu0 0
    %1638 = vmatpush1.bf16.msra.mxu0 0
    %1639 = vmatprep.subr.bf16.mxu0 0
    %1640 = vmatpush1.bf16.msra.mxu0 0
    %1641 = vmatprep.subr.bf16.mxu0 0
    %1642 = vmatpush1.bf16.msra.mxu0 0
    %1643 = vmatprep.subr.bf16.mxu0 0
    %1644 = vmatpush1.bf16.msra.mxu0 0
    %1645 = vmatprep.subr.bf16.mxu0 0
    %1646 = vmatpush1.bf16.msra.mxu0 0
    %1647 = vmatprep.subr.bf16.mxu0 0
    %1648 = vmatpush1.bf16.msra.mxu0 0
    %1649 = vmatprep.mubr.bf16.mxu0 0
    %1650 = vmatmul.mubr.bf16.gmra.mrb[0].mxu0 %v1615
    %v1651 = vpop.f32.mrb[0].mxu0
    %v1652 = vadd.f32 0.0, %v1651
    %v1653 = vpop.f32.mrb[0].mxu0
    %v1654 = vpop.f32.mrb[0].mxu0
    %v1655 = vadd.f32 0.0, %v1654
    %v1656 = vpop.f32.mrb[0].mxu0
    %1657 = vdwg.mxu0
    %v1658 = vadd.f32 %v1608, %v1652
    %v1659 = vadd.f32 %v1609, %v1655
    %v1660 = vxor.u32 %v1658, 2147483648
    %v1661 = vxor.u32 %v1659, 2147483648
    %v1662 = vmul.f32 %v1660, 1.442695
    %v1663 = vpow.pop %v1662
    %v1664 = vmul.f32 %v1661, 1.442695
    %v1665 = vpow.pop %v1664
    %v1666 = vadd.f32 %v1663, 1.0
    %v1667 = vadd.f32 %v1665, 1.0
    %v1668 = vrcp.pop %v1666
    %v1669 = vmul.f32 1.0, %v1668
    %v1670 = vrcp.pop %v1667
    %v1671 = vmul.f32 1.0, %v1670
    %v1672 = vtanh.pop %v1658
    %v1673 = vtanh.pop %v1659
    %v1674 = vmul.f32 %v1669, %v1593
    %v1675 = vmul.f32 %v1671, %v1594
    %1678 = vrot.lane.b32.xlu0 %v1672, 32
    %v1679 = vpop.permute.xlu0 %1678
    %1680 = vrot.lane.b32.xlu0 %v1673, 32
    %v1681 = vpop.permute.xlu0 %1680
    %v1684 = vmul.f32 %v1669, %v1679
    %v1685 = vmul.f32 %v1671, %v1681
    %1688 = vrot.lane.b32.xlu0 %v1684, 32
    %v1689 = vpop.permute.xlu0 %1688
    %1690 = vrot.lane.b32.xlu0 %v1685, 32
    %v1691 = vpop.permute.xlu0 %1690
    %v1694 = vadd.f32 %v1674, %v1689
    %v1695 = vadd.f32 %v1675, %v1691
    %v1696 = vtanh.pop %v1694
    %v1697 = vtanh.pop %v1695
    %1700 = vrot.lane.b32.xlu0 %v1696, 32
    %v1701 = vpop.permute.xlu0 %1700
    %1702 = vrot.lane.b32.xlu0 %v1697, 32
    %v1703 = vpop.permute.xlu0 %1702
    %v1706 = vmul.f32 %v1669, %v1701
    %v1707 = vmul.f32 %v1671, %v1703
    %s1708 = scalar_lea.vmem [#allocation2], 80
    %v1709 = vld [vmem:[%s1708] sm:$0xff]
    %v1710 = vld [vmem:[%s1708 + $0x8] sm:$0xff]
    %v1711 = vpack.c.bf16 %v1707, %v1706
    %1713 = vrot.lane.b32.xlu0 %v1711, 64
    %v1714 = vpop.permute.xlu0 %1713
    %v1716 = vsel %vm86, %v1714, 0
    %1718 = vmatprep.subr.bf16.mxu0 0
    %1719 = vmatpush1.bf16.msra.mxu0 %v1209
    %1720 = vmatprep.subr.bf16.mxu0 0
    %1721 = vmatpush1.bf16.msra.mxu0 %v1210
    %1722 = vmatprep.subr.bf16.mxu0 0
    %1723 = vmatpush1.bf16.msra.mxu0 0
    %1724 = vmatprep.subr.bf16.mxu0 0
    %1725 = vmatpush1.bf16.msra.mxu0 0
    %1726 = vmatprep.subr.bf16.mxu0 0
    %1727 = vmatpush1.bf16.msra.mxu0 0
    %1728 = vmatprep.subr.bf16.mxu0 0
    %1729 = vmatpush1.bf16.msra.mxu0 0
    %1730 = vmatprep.subr.bf16.mxu0 0
    %1731 = vmatpush1.bf16.msra.mxu0 0
    %1732 = vmatprep.subr.bf16.mxu0 0
    %1733 = vmatpush1.bf16.msra.mxu0 0
    %1734 = vmatprep.subr.bf16.mxu0 0
    %1735 = vmatpush1.bf16.msra.mxu0 0
    %1736 = vmatprep.subr.bf16.mxu0 0
    %1737 = vmatpush1.bf16.msra.mxu0 0
    %1738 = vmatprep.subr.bf16.mxu0 0
    %1739 = vmatpush1.bf16.msra.mxu0 0
    %1740 = vmatprep.subr.bf16.mxu0 0
    %1741 = vmatpush1.bf16.msra.mxu0 0
    %1742 = vmatprep.subr.bf16.mxu0 0
    %1743 = vmatpush1.bf16.msra.mxu0 0
    %1744 = vmatprep.subr.bf16.mxu0 0
    %1745 = vmatpush1.bf16.msra.mxu0 0
    %1746 = vmatprep.subr.bf16.mxu0 0
    %1747 = vmatpush1.bf16.msra.mxu0 0
    %1748 = vmatprep.subr.bf16.mxu0 0
    %1749 = vmatpush1.bf16.msra.mxu0 0
    %1750 = vmatprep.mubr.bf16.mxu0 0
    %1751 = vmatmul.mubr.bf16.gmra.mrb[0].mxu0 %v1716
    %v1752 = vpop.f32.mrb[0].mxu0
    %v1753 = vadd.f32 0.0, %v1752
    %v1754 = vpop.f32.mrb[0].mxu0
    %v1755 = vpop.f32.mrb[0].mxu0
    %v1756 = vadd.f32 0.0, %v1755
    %v1757 = vpop.f32.mrb[0].mxu0
    %1758 = vdwg.mxu0
    %v1759 = vadd.f32 %v1709, %v1753
    %v1760 = vadd.f32 %v1710, %v1756
    %v1761 = vxor.u32 %v1759, 2147483648
    %v1762 = vxor.u32 %v1760, 2147483648
    %v1763 = vmul.f32 %v1761, 1.442695
    %v1764 = vpow.pop %v1763
    %v1765 = vmul.f32 %v1762, 1.442695
    %v1766 = vpow.pop %v1765
    %v1767 = vadd.f32 %v1764, 1.0
    %v1768 = vadd.f32 %v1766, 1.0
    %v1769 = vrcp.pop %v1767
    %v1770 = vmul.f32 1.0, %v1769
    %v1771 = vrcp.pop %v1768
    %v1772 = vmul.f32 1.0, %v1771
    %v1773 = vtanh.pop %v1759
    %v1774 = vtanh.pop %v1760
    %v1775 = vmul.f32 %v1770, %v1694
    %v1776 = vmul.f32 %v1772, %v1695
    %1779 = vrot.lane.b32.xlu0 %v1773, 32
    %v1780 = vpop.permute.xlu0 %1779
    %1781 = vrot.lane.b32.xlu0 %v1774, 32
    %v1782 = vpop.permute.xlu0 %1781
    %v1785 = vmul.f32 %v1770, %v1780
    %v1786 = vmul.f32 %v1772, %v1782
    %1789 = vrot.lane.b32.xlu0 %v1785, 32
    %v1790 = vpop.permute.xlu0 %1789
    %1791 = vrot.lane.b32.xlu0 %v1786, 32
    %v1792 = vpop.permute.xlu0 %1791
    %v1795 = vadd.f32 %v1775, %v1790
    %v1796 = vadd.f32 %v1776, %v1792
    %v1797 = vtanh.pop %v1795
    %v1798 = vtanh.pop %v1796
    %1801 = vrot.lane.b32.xlu0 %v1797, 32
    %v1802 = vpop.permute.xlu0 %1801
    %1803 = vrot.lane.b32.xlu0 %v1798, 32
    %v1804 = vpop.permute.xlu0 %1803
    %v1807 = vmul.f32 %v1770, %v1802
    %v1808 = vmul.f32 %v1772, %v1804
    %s1809 = scalar_lea.vmem [#allocation2], 96
    %v1810 = vld [vmem:[%s1809] sm:$0xff]
    %v1811 = vld [vmem:[%s1809 + $0x8] sm:$0xff]
    %v1812 = vpack.c.bf16 %v1808, %v1807
    %1814 = vrot.lane.b32.xlu0 %v1812, 64
    %v1815 = vpop.permute.xlu0 %1814
    %v1817 = vsel %vm86, %v1815, 0
    %1819 = vmatprep.subr.bf16.mxu0 0
    %1820 = vmatpush1.bf16.msra.mxu0 %v1209
    %1821 = vmatprep.subr.bf16.mxu0 0
    %1822 = vmatpush1.bf16.msra.mxu0 %v1210
    %1823 = vmatprep.subr.bf16.mxu0 0
    %1824 = vmatpush1.bf16.msra.mxu0 0
    %1825 = vmatprep.subr.bf16.mxu0 0
    %1826 = vmatpush1.bf16.msra.mxu0 0
    %1827 = vmatprep.subr.bf16.mxu0 0
    %1828 = vmatpush1.bf16.msra.mxu0 0
    %1829 = vmatprep.subr.bf16.mxu0 0
    %1830 = vmatpush1.bf16.msra.mxu0 0
    %1831 = vmatprep.subr.bf16.mxu0 0
    %1832 = vmatpush1.bf16.msra.mxu0 0
    %1833 = vmatprep.subr.bf16.mxu0 0
    %1834 = vmatpush1.bf16.msra.mxu0 0
    %1835 = vmatprep.subr.bf16.mxu0 0
    %1836 = vmatpush1.bf16.msra.mxu0 0
    %1837 = vmatprep.subr.bf16.mxu0 0
    %1838 = vmatpush1.bf16.msra.mxu0 0
    %1839 = vmatprep.subr.bf16.mxu0 0
    %1840 = vmatpush1.bf16.msra.mxu0 0
    %1841 = vmatprep.subr.bf16.mxu0 0
    %1842 = vmatpush1.bf16.msra.mxu0 0
    %1843 = vmatprep.subr.bf16.mxu0 0
    %1844 = vmatpush1.bf16.msra.mxu0 0
    %1845 = vmatprep.subr.bf16.mxu0 0
    %1846 = vmatpush1.bf16.msra.mxu0 0
    %1847 = vmatprep.subr.bf16.mxu0 0
    %1848 = vmatpush1.bf16.msra.mxu0 0
    %1849 = vmatprep.subr.bf16.mxu0 0
    %1850 = vmatpush1.bf16.msra.mxu0 0
    %1851 = vmatprep.mubr.bf16.mxu0 0
    %1852 = vmatmul.mubr.bf16.gmra.mrb[0].mxu0 %v1817
    %v1853 = vpop.f32.mrb[0].mxu0
    %v1854 = vadd.f32 0.0, %v1853
    %v1855 = vpop.f32.mrb[0].mxu0
    %v1856 = vpop.f32.mrb[0].mxu0
    %v1857 = vadd.f32 0.0, %v1856
    %v1858 = vpop.f32.mrb[0].mxu0
    %1859 = vdwg.mxu0
    %v1860 = vadd.f32 %v1810, %v1854
    %v1861 = vadd.f32 %v1811, %v1857
    %v1862 = vxor.u32 %v1860, 2147483648
    %v1863 = vxor.u32 %v1861, 2147483648
    %v1864 = vmul.f32 %v1862, 1.442695
    %v1865 = vpow.pop %v1864
    %v1866 = vmul.f32 %v1863, 1.442695
    %v1867 = vpow.pop %v1866
    %v1868 = vadd.f32 %v1865, 1.0
    %v1869 = vadd.f32 %v1867, 1.0
    %v1870 = vrcp.pop %v1868
    %v1871 = vmul.f32 1.0, %v1870
    %v1872 = vrcp.pop %v1869
    %v1873 = vmul.f32 1.0, %v1872
    %v1874 = vtanh.pop %v1860
    %v1875 = vtanh.pop %v1861
    %v1876 = vmul.f32 %v1871, %v1795
    %v1877 = vmul.f32 %v1873, %v1796
    %1880 = vrot.lane.b32.xlu0 %v1874, 32
    %v1881 = vpop.permute.xlu0 %1880
    %1882 = vrot.lane.b32.xlu0 %v1875, 32
    %v1883 = vpop.permute.xlu0 %1882
    %v1886 = vmul.f32 %v1871, %v1881
    %v1887 = vmul.f32 %v1873, %v1883
    %1890 = vrot.lane.b32.xlu0 %v1886, 32
    %v1891 = vpop.permute.xlu0 %1890
    %1892 = vrot.lane.b32.xlu0 %v1887, 32
    %v1893 = vpop.permute.xlu0 %1892
    %v1896 = vadd.f32 %v1876, %v1891
    %v1897 = vadd.f32 %v1877, %v1893
    %v1898 = vtanh.pop %v1896
    %v1899 = vtanh.pop %v1897
    %1902 = vrot.lane.b32.xlu0 %v1898, 32
    %v1903 = vpop.permute.xlu0 %1902
    %1904 = vrot.lane.b32.xlu0 %v1899, 32
    %v1905 = vpop.permute.xlu0 %1904
    %v1908 = vmul.f32 %v1871, %v1903
    %v1909 = vmul.f32 %v1873, %v1905
    %s1910 = scalar_lea.vmem [#allocation2], 112
    %v1911 = vld [vmem:[%s1910] sm:$0xff]
    %v1912 = vld [vmem:[%s1910 + $0x8] sm:$0xff]
    %v1913 = vpack.c.bf16 %v1909, %v1908
    %1915 = vrot.lane.b32.xlu0 %v1913, 64
    %v1916 = vpop.permute.xlu0 %1915
    %v1918 = vsel %vm86, %v1916, 0
    %1920 = vmatprep.subr.bf16.mxu0 0
    %1921 = vmatpush1.bf16.msra.mxu0 %v1209
    %1922 = vmatprep.subr.bf16.mxu0 0
    %1923 = vmatpush1.bf16.msra.mxu0 %v1210
    %1924 = vmatprep.subr.bf16.mxu0 0
    %1925 = vmatpush1.bf16.msra.mxu0 0
    %1926 = vmatprep.subr.bf16.mxu0 0
    %1927 = vmatpush1.bf16.msra.mxu0 0
    %1928 = vmatprep.subr.bf16.mxu0 0
    %1929 = vmatpush1.bf16.msra.mxu0 0
    %1930 = vmatprep.subr.bf16.mxu0 0
    %1931 = vmatpush1.bf16.msra.mxu0 0
    %1932 = vmatprep.subr.bf16.mxu0 0
    %1933 = vmatpush1.bf16.msra.mxu0 0
    %1934 = vmatprep.subr.bf16.mxu0 0
    %1935 = vmatpush1.bf16.msra.mxu0 0
    %1936 = vmatprep.subr.bf16.mxu0 0
    %1937 = vmatpush1.bf16.msra.mxu0 0
    %1938 = vmatprep.subr.bf16.mxu0 0
    %1939 = vmatpush1.bf16.msra.mxu0 0
    %1940 = vmatprep.subr.bf16.mxu0 0
    %1941 = vmatpush1.bf16.msra.mxu0 0
    %1942 = vmatprep.subr.bf16.mxu0 0
    %1943 = vmatpush1.bf16.msra.mxu0 0
    %1944 = vmatprep.subr.bf16.mxu0 0
    %1945 = vmatpush1.bf16.msra.mxu0 0
    %1946 = vmatprep.subr.bf16.mxu0 0
    %1947 = vmatpush1.bf16.msra.mxu0 0
    %1948 = vmatprep.subr.bf16.mxu0 0
    %1949 = vmatpush1.bf16.msra.mxu0 0
    %1950 = vmatprep.subr.bf16.mxu0 0
    %1951 = vmatpush1.bf16.msra.mxu0 0
    %1952 = vmatprep.mubr.bf16.mxu0 0
    %1953 = vmatmul.mubr.bf16.gmra.mrb[0].mxu0 %v1918
    %v1954 = vpop.f32.mrb[0].mxu0
    %v1955 = vadd.f32 0.0, %v1954
    %v1956 = vpop.f32.mrb[0].mxu0
    %v1957 = vpop.f32.mrb[0].mxu0
    %v1958 = vadd.f32 0.0, %v1957
    %v1959 = vpop.f32.mrb[0].mxu0
    %1960 = vdwg.mxu0
    %v1961 = vadd.f32 %v1911, %v1955
    %v1962 = vadd.f32 %v1912, %v1958
    %v1963 = vxor.u32 %v1961, 2147483648
    %v1964 = vxor.u32 %v1962, 2147483648
    %v1965 = vmul.f32 %v1963, 1.442695
    %v1966 = vpow.pop %v1965
    %v1967 = vmul.f32 %v1964, 1.442695
    %v1968 = vpow.pop %v1967
    %v1969 = vadd.f32 %v1966, 1.0
    %v1970 = vadd.f32 %v1968, 1.0
    %v1971 = vrcp.pop %v1969
    %v1972 = vmul.f32 1.0, %v1971
    %v1973 = vrcp.pop %v1970
    %v1974 = vmul.f32 1.0, %v1973
    %v1975 = vtanh.pop %v1961
    %v1976 = vtanh.pop %v1962
    %v1977 = vmul.f32 %v1972, %v1896
    %v1978 = vmul.f32 %v1974, %v1897
    %1981 = vrot.lane.b32.xlu0 %v1975, 32
    %v1982 = vpop.permute.xlu0 %1981
    %1983 = vrot.lane.b32.xlu0 %v1976, 32
    %v1984 = vpop.permute.xlu0 %1983
    %v1987 = vmul.f32 %v1972, %v1982
    %v1988 = vmul.f32 %v1974, %v1984
    %1991 = vrot.lane.b32.xlu0 %v1987, 32
    %v1992 = vpop.permute.xlu0 %1991
    %1993 = vrot.lane.b32.xlu0 %v1988, 32
    %v1994 = vpop.permute.xlu0 %1993
    %v1997 = vadd.f32 %v1977, %v1992
    %v1998 = vadd.f32 %v1978, %v1994
    %v1999 = vtanh.pop %v1997
    %v2000 = vtanh.pop %v1998
    %2003 = vrot.lane.b32.xlu0 %v1999, 32
    %v2004 = vpop.permute.xlu0 %2003
    %2005 = vrot.lane.b32.xlu0 %v2000, 32
    %v2006 = vpop.permute.xlu0 %2005
    %v2009 = vmul.f32 %v1972, %v2004
    %v2010 = vmul.f32 %v1974, %v2006
    %v2011 = vpack.c.bf16 %v2010, %v2009
    %v2012 = vld [vmem:[%s5] sm:$0xf]
    %v2013 = vld [vmem:[%s5 + $0x4] sm:$0xf]
    %v2014 = vld [vmem:[%s5 + $0x8] sm:$0xf]
    %v2015 = vld [vmem:[%s5 + $0xc] sm:$0xf]
    %v2016 = vld [vmem:[%s6] sm:$0x1]
    %v2018 = vlaneseq
    %v2019 = vshrl.u32 %v2018, 7
    %v2020 = vsub.s32 0, %v2019
    %v2021 = vrot.slane %v2016, %v2020
    %2024 = vrot.lane.b32.xlu0 %v2011, 64
    %v2025 = vpop.permute.xlu0 %2024
    %v2030 = vunpack.c.l.b16 %v2012
    %v2031 = vunpack.c.l.b16 %v2013
    %v2032 = vunpack.c.l.b16 %v2014
    %v2033 = vunpack.c.l.b16 %v2015
    %v2034 = vpack.c.b16 %v2031, %v2030
    %v2035 = vpack.c.b16 %v2033, %v2032
    %v2039 = vsel %vm86, %v2025, 0
    %2041 = vmatprep.subr.bf16.mxu0 0
    %2042 = vmatpush1.bf16.msra.mxu0 %v2034
    %2043 = vmatprep.subr.bf16.mxu0 0
    %2044 = vmatpush1.bf16.msra.mxu0 %v2035
    %2045 = vmatprep.subr.bf16.mxu0 0
    %2046 = vmatpush1.bf16.msra.mxu0 0
    %2047 = vmatprep.subr.bf16.mxu0 0
    %2048 = vmatpush1.bf16.msra.mxu0 0
    %2049 = vmatprep.subr.bf16.mxu0 0
    %2050 = vmatpush1.bf16.msra.mxu0 0
    %2051 = vmatprep.subr.bf16.mxu0 0
    %2052 = vmatpush1.bf16.msra.mxu0 0
    %2053 = vmatprep.subr.bf16.mxu0 0
    %2054 = vmatpush1.bf16.msra.mxu0 0
    %2055 = vmatprep.subr.bf16.mxu0 0
    %2056 = vmatpush1.bf16.msra.mxu0 0
    %2057 = vmatprep.subr.bf16.mxu0 0
    %2058 = vmatpush1.bf16.msra.mxu0 0
    %2059 = vmatprep.subr.bf16.mxu0 0
    %2060 = vmatpush1.bf16.msra.mxu0 0
    %2061 = vmatprep.subr.bf16.mxu0 0
    %2062 = vmatpush1.bf16.msra.mxu0 0
    %2063 = vmatprep.subr.bf16.mxu0 0
    %2064 = vmatpush1.bf16.msra.mxu0 0
    %2065 = vmatprep.subr.bf16.mxu0 0
    %2066 = vmatpush1.bf16.msra.mxu0 0
    %2067 = vmatprep.subr.bf16.mxu0 0
    %2068 = vmatpush1.bf16.msra.mxu0 0
    %2069 = vmatprep.subr.bf16.mxu0 0
    %2070 = vmatpush1.bf16.msra.mxu0 0
    %2071 = vmatprep.subr.bf16.mxu0 0
    %2072 = vmatpush1.bf16.msra.mxu0 0
    %2073 = vmatprep.mubr.bf16.mxu0 0
    %2074 = vmatmul.mubr.bf16.gmra.mrb[0].mxu0 %v2039
    %v2075 = vpop.f32.mrb[0].mxu0
    %v2076 = vadd.f32 %v2021, %v2075
    %v2077 = vpop.f32.mrb[0].mxu0
    %v2078 = vpop.f32.mrb[0].mxu0
    %v2079 = vadd.f32 %v2021, %v2078
    %v2080 = vpop.f32.mrb[0].mxu0
    %2081 = vdwg.mxu0
    %vm2082 = vcmask 31744
    %2083 = vst.msk [vmem:[%s7] sm:$0xff] %vm2082, %v2076
    %2084 = vst.msk [vmem:[%s7 + $0x8] sm:$0xff] %vm2082, %v2079
    // Predicated region
    $region42: #{tpu_custom_call.1} parent=1 // pred_check
      _
    $region43: #{tpu_custom_call.1} parent=1 // pred_check_branch
      %2086 = sbr.rel (0) target = $region45
    $region44: #{tpu_custom_call.1} parent=1 // pred_region
      _
    $region45: #{tpu_custom_call.1} parent=1 // pred_fallthru
      _
    // Predicated region
    $region46: #{tpu_custom_call.1} parent=1 // pred_check
      _
    $region47: #{tpu_custom_call.1} parent=1 // pred_check_branch
      %2088 = sbr.rel (0) target = $region49
    $region48: #{tpu_custom_call.1} parent=1 // pred_region
      _
    $region49: #{tpu_custom_call.1} parent=1 // pred_fallthru
      _
    %2089 = vsyncpa [#allocation5], 1
    %2090 = vsyncpa [#allocation7], 1

</llo_original>
